<compile_context>
chip_gen: v6e
topology: v6e:2x2x1
jax: 0.10.0
libtpu: 0.0.40
codegen_flags: <defaults>
</compile_context>

<pallas_src>
import functools
import numpy as np
import jax
import jax.numpy as jnp
from jax import lax
from jax.experimental import pallas as pl
from jax.experimental.pallas import tpu as pltpu

_MASK = -2.0e30     # finite mask fill, strictly below the running-max init
_M_INIT = -1.0e30   # online-softmax running-max init (exp(_MASK - _M_INIT) == 0)


# ----------------------------- Pallas kernels -----------------------------

def _linear_kernel(x_ref, w_ref, b_ref, o_ref, acc_ref):
    k = pl.program_id(2)

    @pl.when(k == 0)
    def _():
        acc_ref[...] = jnp.zeros(acc_ref.shape, acc_ref.dtype)

    acc_ref[...] += jnp.dot(x_ref[...], w_ref[...],
                            preferred_element_type=jnp.float32)

    @pl.when(k == pl.num_programs(2) - 1)
    def _():
        o_ref[...] = (acc_ref[...] + b_ref[...]).astype(o_ref.dtype)


def pallas_linear(x, w, b, *, out_dtype=jnp.float32,
                  tm_cap=256, tn_cap=1024, tk_cap=1024):
    """x:(M,K) @ w:(K,N) + b:(1,N) -> (M,N). bf16 MXU operands, f32 accumulator.
    Larger default tiles keep the 256-wide MXUs on v6e/v7x fed; still well under
    the 32 MiB scoped VMEM on v7x."""
    M, K = x.shape
    N = w.shape[1]
    tm = M if M <= tm_cap else tm_cap
    tn = N if N <= tn_cap else tn_cap
    tk = K if K <= tk_cap else tk_cap
    assert M % tm == 0 and N % tn == 0 and K % tk == 0
    xb = x.astype(jnp.bfloat16)
    wb = w.astype(jnp.bfloat16)
    return pl.pallas_call(
        _linear_kernel,
        out_shape=jax.ShapeDtypeStruct((M, N), out_dtype),
        grid_spec=pltpu.PrefetchScalarGridSpec(
            num_scalar_prefetch=0,
            grid=(M // tm, N // tn, K // tk),
            in_specs=[pl.BlockSpec((tm, tk), lambda i, j, k: (i, k)),
                      pl.BlockSpec((tk, tn), lambda i, j, k: (k, j)),
                      pl.BlockSpec((1, tn), lambda i, j, k: (0, j))],
            out_specs=pl.BlockSpec((tm, tn), lambda i, j, k: (i, j)),
            scratch_shapes=[pltpu.VMEM((tm, tn), jnp.float32)]),
        compiler_params=pltpu.CompilerParams(
            dimension_semantics=("parallel", "parallel", "arbitrary")),
    )(xb, wb, b.astype(jnp.float32))


def _rope_rows_kernel(x_ref, cos_ref, sin_ref, o_ref):
    x = x_ref[...].astype(jnp.float32)
    half = x.shape[-1] // 2
    # rotate_half sign is pre-folded into sin: roll (XLU) + 2 mul + add.
    o_ref[...] = (x * cos_ref[...]
                  + pltpu.roll(x, shift=half, axis=1) * sin_ref[...]
                  ).astype(o_ref.dtype)


def pallas_rope_rows(x, cos, sin_signed, *, out_dtype=jnp.bfloat16, rows_cap=1024):
    """Row-blocked RoPE over (N, D) tensors (sign folded into sin), bf16 out."""
    N, D = x.shape
    br = rows_cap if (N % rows_cap == 0) else N
    # TODO(synk): fold the writer-side key RoPE into the QKV linear finalize to
    # save one HBM read+write of K entirely.
    return pl.pallas_call(
        _rope_rows_kernel,
        out_shape=jax.ShapeDtypeStruct((N, D), out_dtype),
        grid_spec=pltpu.PrefetchScalarGridSpec(
            num_scalar_prefetch=0,
            grid=(N // br,),
            in_specs=[pl.BlockSpec((br, D), lambda i: (i, 0)),
                      pl.BlockSpec((br, D), lambda i: (i, 0)),
                      pl.BlockSpec((br, D), lambda i: (i, 0))],
            out_specs=pl.BlockSpec((br, D), lambda i: (i, 0))),
        compiler_params=pltpu.CompilerParams(dimension_semantics=("parallel",)),
    )(x, cos.astype(jnp.float32), sin_signed.astype(jnp.float32))


def _hogwild_kernel(loc_ref, frags_ref, q_ref, k_ref, v_ref, cos_ref, sin_ref,
                    o_ref, m_sc, l_sc, acc_sc, *, num_groups, head_dim, t_len,
                    num_workers, chunk):
    # grid = (kv head, segment s, key chunk c); (s, c) are the reduction axes.
    G, D, T, B = num_groups, head_dim, t_len, num_workers
    s = pl.program_id(1)
    c = pl.program_id(2)
    half = D // 2

    @pl.when(jnp.logical_and(s == 0, c == 0))
    def _():
        m_sc[...] = jnp.full(m_sc.shape, _M_INIT, m_sc.dtype)
        l_sc[...] = jnp.zeros(l_sc.shape, l_sc.dtype)
        acc_sc[...] = jnp.zeros(acc_sc.shape, acc_sc.dtype)

    n_keys = frags_ref[s]          # valid (un-padded) keys in this segment
    chunk_start = c * chunk

    @pl.when(chunk_start < n_keys)   # skip fully padded tail chunks
    def _():
        q = q_ref[...]               # (B*T, G*D) bf16 : the q columns of qkv
        cos = cos_ref[0]             # (B*T, D) f32, softmax scale folded in
        sin = sin_ref[0]             # (B*T, D) f32, rotate_half sign + scale
        k = k_ref[0, 0]              # (chunk, D) bf16 segment keys (rotated)
        v = v_ref[0, 0]              # (chunk, D) bf16 segment values
        BT = q.shape[0]

        # (B*T, 1) mask-limit column from SMEM scalars; only the final compare
        # and select below are (B*T, chunk).
        row = lax.broadcasted_iota(jnp.int32, (BT, 1), 0)
        if (T & (T - 1)) == 0:
            t_of_row = jnp.bitwise_and(row, T - 1)
        else:
            t_of_row = row % T
        base = jnp.zeros_like(row)
        for b in range(B):           # B is small & static -> unrolled
            base = jnp.where(row >= b * T, loc_ref[s, b], base)
        lim = jnp.minimum(base + t_of_row, n_keys - 1)                 # (BT, 1)
        col = chunk_start + lax.broadcasted_iota(jnp.int32, (BT, chunk), 1)
        ok = col <= lim                                                # (BT, chunk)

        # Static unrolled loop over the GQA group: every head reuses the same
        # K/V chunk already resident in VMEM (no re-DMA) and only lane-aligned
        # static slices are used (no in-kernel reshapes/transposes).
        for g in range(G):
            qg = q[:, g * D:(g + 1) * D].astype(jnp.float32)
            rq = (qg * cos + pltpu.roll(qg, shift=half, axis=1) * sin
                  ).astype(jnp.bfloat16)
            sg = lax.dot_general(rq, k, (((1,), (1,)), ((), ())),
                                 preferred_element_type=jnp.float32)  # (BT, chunk)
            sg = jnp.where(ok, sg, _MASK)

            m_prev = m_sc[g]
            m_new = jnp.maximum(m_prev, jnp.max(sg, axis=-1, keepdims=True))
            alpha = jnp.exp(m_prev - m_new)
            p = jnp.exp(sg - m_new)
            l_sc[g] = alpha * l_sc[g] + jnp.sum(p, axis=-1, keepdims=True)
            acc_sc[g] = alpha * acc_sc[g] + jnp.dot(
                p.astype(jnp.bfloat16), v, preferred_element_type=jnp.float32)
            m_sc[g] = m_new

    @pl.when(jnp.logical_and(s == pl.num_programs(1) - 1,
                             c == pl.num_programs(2) - 1))
    def _():
        for g in range(G):
            inv_l = pl.reciprocal(l_sc[g], approx=True)
            o_ref[:, g * D:(g + 1) * D] = (acc_sc[g] * inv_l).astype(o_ref.dtype)


def pallas_hogwild_attention(qkv, keys, values, cos_t, sin_t, loc_start, frags, *,
                             num_heads, num_kv_heads, head_dim, t_len, chunk):
    """qkv:(B*T,(H+2KVH)*D) bf16 (q columns read in place), keys/values:
    (S,KVH,Lpad,D) bf16, cos_t/sin_t:(S,B*T,D) f32 (scale+sign folded),
    loc_start:(S,B) i32, frags:(S,) i32.  Returns (B*T, H*D) bf16."""
    BT = qkv.shape[0]
    H, KVH, D = num_heads, num_kv_heads, head_dim
    G = H // KVH
    S, _, Lpad, _ = keys.shape
    assert Lpad % chunk == 0
    C = Lpad // chunk
    B = BT // t_len

    kernel = functools.partial(_hogwild_kernel, num_groups=G, head_dim=D,
                               t_len=t_len, num_workers=B, chunk=chunk)

    def kv_index(kv, s, c, loc, fr):
        # Clamp to the last chunk holding real keys: past-end chunks re-request
        # the same block (DMA dedup) and their compute is skipped in-kernel.
        c_last = (fr[s] - 1) // chunk
        return (s, kv, jnp.minimum(c, c_last), 0)

    # TODO(synk): sweep pipeline_mode=pl.Buffered(3) on the K/V specs once the
    # fragment-boundary DMA latency shows up as exposed at production lengths.
    return pl.pallas_call(
        kernel,
        out_shape=jax.ShapeDtypeStruct((BT, H * D), jnp.bfloat16),
        grid_spec=pltpu.PrefetchScalarGridSpec(
            num_scalar_prefetch=2,
            grid=(KVH, S, C),
            in_specs=[
                pl.BlockSpec((BT, G * D), lambda kv, s, c, loc, fr: (0, kv)),
                pl.BlockSpec((1, 1, chunk, D), kv_index),
                pl.BlockSpec((1, 1, chunk, D), kv_index),
                pl.BlockSpec((1, BT, D), lambda kv, s, c, loc, fr: (s, 0, 0)),
                pl.BlockSpec((1, BT, D), lambda kv, s, c, loc, fr: (s, 0, 0)),
            ],
            out_specs=pl.BlockSpec((BT, G * D), lambda kv, s, c, loc, fr: (0, kv)),
            scratch_shapes=[pltpu.VMEM((G, BT, 1), jnp.float32),
                            pltpu.VMEM((G, BT, 1), jnp.float32),
                            pltpu.VMEM((G, BT, D), jnp.float32)]),
        compiler_params=pltpu.CompilerParams(
            dimension_semantics=("parallel", "arbitrary", "arbitrary")),
    )(loc_start, frags, qkv, keys, values, cos_t, sin_t)


# ----------------------------- JAX glue -----------------------------------

def rope_cos_sin(positions, dim, theta=10000.0):
    inv_freq = 1.0 / (theta ** (jnp.arange(0, dim, 2, dtype=jnp.float32) / dim))
    freqs = positions.astype(jnp.float32)[..., None] * inv_freq
    emb = jnp.concatenate([freqs, freqs], axis=-1)
    return jnp.cos(emb), jnp.sin(emb)


def _fold_rotate_sign(sin):
    """rotate_half(x) == sign * roll(x, D/2); fold the sign into the sin table."""
    D = sin.shape[-1]
    sign = jnp.where(jnp.arange(D) < D // 2, -1.0, 1.0).astype(sin.dtype)
    return sin * sign


def _round_up(x, m):
    return -(-x // m) * m


def build_hogwild_static(pre_lens, orders, write_to, t_len, chunk):
    """Static (host-side) Hogwild bookkeeping: post-update fragment lengths,
    per-(segment, worker) token locations, padded length, write offsets."""
    S, B = len(pre_lens), len(orders)
    frags = np.array(pre_lens, dtype=np.int64)
    for w in range(B):
        frags[write_to[w]] += t_len
    Lpad = int(_round_up(int(frags.max()), chunk))
    loc = np.zeros((S, B, t_len), dtype=np.int32)
    for w, order in enumerate(orders):        # mirrors HogwildCache.update
        pos = 0
        for seg in reversed(order):
            pos += int(frags[seg])
            loc[seg, w] = np.arange(pos - t_len, pos, dtype=np.int32)
    write_off = [int(pre_lens[write_to[w]]) for w in range(B)]
    return dict(frags=np.asarray(frags, np.int32), loc=loc, Lpad=Lpad,
                write_off=write_off)


def prepare_cache_buffers(cache_keys, cache_values, meta):
    """One-time placement of pre-existing fragments into persistent padded bf16
    buffers (S, KVH, Lpad, D).  Persists across decode steps in a real loop."""
    S = len(cache_keys)
    KVH, _, D = cache_keys[0].shape
    Lpad = meta["Lpad"]
    kbuf = jnp.zeros((S, KVH, Lpad, D), jnp.bfloat16)
    vbuf = jnp.zeros((S, KVH, Lpad, D), jnp.bfloat16)
    for s in range(S):
        L = cache_keys[s].shape[1]
        kbuf = kbuf.at[s, :, :L, :].set(cache_keys[s].astype(jnp.bfloat16))
        vbuf = vbuf.at[s, :, :L, :].set(cache_values[s].astype(jnp.bfloat16))
    return kbuf, vbuf


def hogwild_cache_insert(kbuf, vbuf, k_new, v_new, write_to, write_off):
    """Per-step cache update: only the new tokens are written (no full-cache
    concat/pad/stack/re-cast).
    TODO(synk): alias/donate kbuf,vbuf (input_output_aliases) in the decode
    loop so the update is truly in place."""
    for w, seg in enumerate(write_to):
        off = write_off[w]
        kbuf = lax.dynamic_update_slice(
            kbuf, k_new[w][None].astype(jnp.bfloat16), (seg, 0, off, 0))
        vbuf = lax.dynamic_update_slice(
            vbuf, v_new[w][None].astype(jnp.bfloat16), (seg, 0, off, 0))
    return kbuf, vbuf


def llama_attention_forward(hidden_states, params, pos_cos, pos_sin, cache, *,
                            chunk):
    """LlamaAttentionMod.forward (inference; attention_dropout is a no-op)."""
    B, T, hidden = hidden_states.shape
    H, KVH, D = params["num_heads"], params["num_kv_heads"], params["head_dim"]
    scale = D ** -0.5
    x2d = hidden_states.reshape(B * T, hidden)

    # Fused QKV projection: x streams through the MXU once; bf16 output halves
    # the HBM writeback/re-read between kernels.
    w_qkv = jnp.concatenate([params["wq"], params["wk"], params["wv"]], axis=1)
    b_qkv = jnp.concatenate([params["bq"], params["bk"], params["bv"]], axis=1)
    qkv = pallas_linear(x2d, w_qkv, b_qkv, out_dtype=jnp.bfloat16)

    # Writer-side key RoPE over rows ordered (b, t, kv_head).
    k_rows = qkv[:, H * D:(H + KVH) * D].reshape(B * T * KVH, D)
    cos_k = jnp.broadcast_to(pos_cos[:, :, None, :], (B, T, KVH, D)).reshape(-1, D)
    sin_k = jnp.broadcast_to(_fold_rotate_sign(pos_sin)[:, :, None, :],
                             (B, T, KVH, D)).reshape(-1, D)
    k_rot = pallas_rope_rows(k_rows, cos_k, sin_k)                    # bf16
    k_new = k_rot.reshape(B, T, KVH, D).transpose(0, 2, 1, 3)         # (B,KVH,T,D)
    v_new = qkv[:, (H + KVH) * D:].reshape(B, T, KVH, D).transpose(0, 2, 1, 3)

    kbuf, vbuf = hogwild_cache_insert(cache["kbuf"], cache["vbuf"], k_new, v_new,
                                      cache["write_to"],
                                      cache["meta"]["write_off"])

    meta = cache["meta"]
    loc = jnp.asarray(meta["loc"])                                     # (S,B,T)
    frags = jnp.asarray(meta["frags"])                                 # (S,)
    S = loc.shape[0]
    cosq, sinq = rope_cos_sin(loc, D, cache["theta"])                  # (S,B,T,D)
    # Fold softmax scale into cos and (sign + scale) into sin; no G tiling.
    cos_t = (cosq * scale).astype(jnp.float32).reshape(S, B * T, D)
    sin_t = (_fold_rotate_sign(sinq) * scale).astype(jnp.float32).reshape(S, B * T, D)
    loc_start = loc[:, :, 0].astype(jnp.int32)                         # (S, B)

    # torch.ops.libhogatt.hogwild_fused (closed CUDA op): per-segment query
    # re-rotation + joint online softmax over all fragments with the
    # location-based causal mask, reimplemented in _hogwild_kernel.
    attn = pallas_hogwild_attention(qkv, kbuf, vbuf, cos_t, sin_t, loc_start,
                                    frags, num_heads=H, num_kv_heads=KVH,
                                    head_dim=D, t_len=T, chunk=chunk)  # (B*T,H*D)
    out = pallas_linear(attn, params["wo"],
                        jnp.zeros((1, hidden), jnp.float32),
                        out_dtype=jnp.float32)
    return out.reshape(B, T, hidden)


# ----------------------------- pure-JAX reference --------------------------

def _ref_rotate_half(x):
    half = x.shape[-1] // 2
    return jnp.concatenate([-x[..., half:], x[..., :half]], axis=-1)


def reference_forward(hidden_states, params, pos_cos, pos_sin, cache):
    B, T, hidden = hidden_states.shape
    H, KVH, D = params["num_heads"], params["num_kv_heads"], params["head_dim"]
    G = H // KVH
    scale = D ** -0.5
    q = (hidden_states @ params["wq"] + params["bq"]).reshape(B, T, H, D)
    q = q.transpose(0, 2, 1, 3)
    k = (hidden_states @ params["wk"] + params["bk"]).reshape(B, T, KVH, D)
    k = k.transpose(0, 2, 1, 3)
    v = (hidden_states @ params["wv"] + params["bv"]).reshape(B, T, KVH, D)
    v = v.transpose(0, 2, 1, 3)
    k = k * pos_cos[:, None] + _ref_rotate_half(k) * pos_sin[:, None]

    kbuf, vbuf = hogwild_cache_insert(cache["kbuf"], cache["vbuf"], k, v,
                                      cache["write_to"],
                                      cache["meta"]["write_off"])
    meta = cache["meta"]
    loc = jnp.asarray(meta["loc"])
    frags = jnp.asarray(meta["frags"])
    cosq, sinq = rope_cos_sin(loc, D, cache["theta"])                  # (S,B,T,D)
    keys_f = kbuf.astype(jnp.float32)                                  # (S,KVH,L,D)
    vals_f = vbuf.astype(jnp.float32)
    S, _, L, _ = keys_f.shape

    rq = q[None] * cosq[:, :, None] + _ref_rotate_half(q)[None] * sinq[:, :, None]
    k_rep = jnp.repeat(keys_f, G, axis=1)                              # (S,H,L,D)
    v_rep = jnp.repeat(vals_f, G, axis=1)
    scores = jnp.einsum("sbhtd,shld->sbhtl", rq, k_rep) * scale
    limit = jnp.minimum(loc, frags[:, None, None] - 1)                 # (S,B,T)
    j = jnp.arange(L)
    mask = j[None, None, None, None, :] <= limit[:, :, None, :, None]
    scores = jnp.where(mask, scores, -jnp.inf)
    sc = jnp.moveaxis(scores, 0, -2).reshape(B, H, T, S * L)
    p = jax.nn.softmax(sc, axis=-1)
    v_all = jnp.moveaxis(v_rep, 0, 1).reshape(H, S * L, D)
    attn = jnp.einsum("bhtk,hkd->bhtd", p, v_all)
    attn = attn.transpose(0, 2, 1, 3).reshape(B * T, H * D)
    return (attn @ params["wo"]).reshape(B, T, hidden)


# ----------------------------- main ----------------------------------------

if __name__ == "__main__":
    B, T = 2, 8               # workers, new tokens per worker
    hidden = 512
    H, KVH, D = 4, 2, 128     # heads, kv heads (GQA group = 2), head_dim
    theta = 10000.0
    CHUNK = 16                # small here so the key-chunk axis + padded-chunk
                              # skip path is exercised; use 512-1024 (v7x: 512)
                              # at production context lengths.

    key = jax.random.PRNGKey(0)
    ks = jax.random.split(key, 16)
    init = lambda k, shape, s=0.02: jax.random.normal(k, shape, jnp.float32) * s

    params = dict(
        num_heads=H, num_kv_heads=KVH, head_dim=D,
        wq=init(ks[0], (hidden, H * D)), bq=init(ks[1], (1, H * D)),
        wk=init(ks[2], (hidden, KVH * D)), bk=init(ks[3], (1, KVH * D)),
        wv=init(ks[4], (hidden, KVH * D)), bv=init(ks[5], (1, KVH * D)),
        wo=init(ks[6], (H * D, hidden)),
    )
    hidden_states = jax.random.normal(ks[7], (B, T, hidden), jnp.float32)

    # Pre-existing Hogwild cache: seg0 = shared prompt, seg1/seg2 = per-worker.
    pre_lens = [32, 8, 24]
    orders = [[0, 2, 1], [0, 1, 2]]   # each worker's ordering of the segments
    write_to = [1, 2]                 # worker w appends its new K/V here
    keys0 = [jax.random.normal(ks[8 + i], (KVH, pre_lens[i], D), jnp.float32) * 0.5
             for i in range(3)]
    values0 = [jax.random.normal(ks[11 + i], (KVH, pre_lens[i], D), jnp.float32) * 0.5
               for i in range(3)]

    meta = build_hogwild_static(pre_lens, orders, write_to, T, CHUNK)
    kbuf, vbuf = prepare_cache_buffers(keys0, values0, meta)
    cache = dict(kbuf=kbuf, vbuf=vbuf, meta=meta, write_to=write_to, theta=theta)

    # position_embeddings input (writer-side positions of the new tokens)
    total_after = sum(pre_lens) + B * T
    positions = jnp.broadcast_to(
        jnp.arange(total_after - T, total_after, dtype=jnp.int32), (B, T))
    pos_cos, pos_sin = rope_cos_sin(positions, D, theta)

    out = llama_attention_forward(hidden_states, params, pos_cos, pos_sin, cache,
                                  chunk=CHUNK)
    out = jax.block_until_ready(out)

    ref = reference_forward(hidden_states, params, pos_cos, pos_sin, cache)
    ref = jax.block_until_ready(ref)
    np.testing.assert_allclose(np.asarray(out), np.asarray(ref),
                               rtol=3e-2, atol=3e-2)
    print("KERNEL_OK")
</pallas_src>

<mosaic_0001>
module attributes {stable_mosaic.version = 11 : i64} {
  func.func @_linear_kernel(%arg0: i32, %arg1: i32, %arg2: i32, %arg3: memref<16x512xbf16, #tpu.memory_space<vmem>>, %arg4: memref<512x1024xbf16, #tpu.memory_space<vmem>>, %arg5: memref<1x1024xf32, #tpu.memory_space<vmem>>, %arg6: memref<16x1024xbf16, #tpu.memory_space<vmem>>, %arg7: memref<16x1024xf32, #tpu.memory_space<vmem>>) attributes {dimension_semantics = [#tpu.dimension_semantics<parallel>, #tpu.dimension_semantics<parallel>, #tpu.dimension_semantics<arbitrary>], iteration_bounds = array<i64: 1, 1, 1>, scalar_prefetch = 0 : i64, scratch_operands = 1 : i64, tpu.core_type = #tpu.core_type<tc>, window_params = [{transform_indices = @transform_0, window_bounds = array<i64: 16, 512>}, {transform_indices = @transform_1, window_bounds = array<i64: 512, 1024>}, {transform_indices = @transform_2, window_bounds = array<i64: 1, 1024>}, {transform_indices = @transform_3, window_bounds = array<i64: 16, 1024>}]} {
    %c0_i32 = arith.constant 0 : i32
    %0 = arith.cmpi eq, %arg2, %c0_i32 : i32
    %1 = arith.extui %0 : i1 to i32
    %c0_i32_0 = arith.constant 0 : i32
    %2 = arith.cmpi ne, %1, %c0_i32_0 : i32
    scf.if %2 {
      %cst_10 = arith.constant 0.000000e+00 : f32
      %12 = vector.broadcast %cst_10 : f32 to vector<16x1024xf32>
      %c0_11 = arith.constant 0 : index
      %c0_12 = arith.constant 0 : index
      %13 = vector.load %arg7[%c0_11, %c0_12] : memref<16x1024xf32, #tpu.memory_space<vmem>>, vector<16x1024xf32>
      tpu.vector_store %arg7[%c0_11, %c0_12], %12 {strides = array<i32>} : memref<16x1024xf32, #tpu.memory_space<vmem>>, vector<16x1024xf32>,
    } else {
    }
    %c0 = arith.constant 0 : index
    %c0_1 = arith.constant 0 : index
    %3 = vector.load %arg7[%c0, %c0_1] : memref<16x1024xf32, #tpu.memory_space<vmem>>, vector<16x1024xf32>
    %c0_2 = arith.constant 0 : index
    %c0_3 = arith.constant 0 : index
    %4 = vector.load %arg3[%c0_2, %c0_3] : memref<16x512xbf16, #tpu.memory_space<vmem>>, vector<16x512xbf16>
    %c0_4 = arith.constant 0 : index
    %c0_5 = arith.constant 0 : index
    %5 = vector.load %arg4[%c0_4, %c0_5] : memref<512x1024xbf16, #tpu.memory_space<vmem>>, vector<512x1024xbf16>
    %cst = arith.constant dense<0.000000e+00> : vector<16x1024xf32>
    %6 = tpu.matmul %4, %5, %cst {dimension_numbers = #tpu.dot_dimension_numbers<[1], [0], [0], [1], [0, 0, 1, 1], [], []>} : vector<16x512xbf16>, vector<512x1024xbf16>, vector<16x1024xf32> -> vector<16x1024xf32>
    %7 = arith.addf %3, %6 : vector<16x1024xf32>
    %c0_6 = arith.constant 0 : index
    %c0_7 = arith.constant 0 : index
    %8 = vector.load %arg7[%c0_6, %c0_7] : memref<16x1024xf32, #tpu.memory_space<vmem>>, vector<16x1024xf32>
    tpu.vector_store %arg7[%c0_6, %c0_7], %7 {strides = array<i32>} : memref<16x1024xf32, #tpu.memory_space<vmem>>, vector<16x1024xf32>,
    %c0_i32_8 = arith.constant 0 : i32
    %9 = arith.cmpi eq, %arg2, %c0_i32_8 : i32
    %10 = arith.extui %9 : i1 to i32
    %c0_i32_9 = arith.constant 0 : i32
    %11 = arith.cmpi ne, %10, %c0_i32_9 : i32
    scf.if %11 {
      %c0_10 = arith.constant 0 : index
      %c0_11 = arith.constant 0 : index
      %12 = vector.load %arg7[%c0_10, %c0_11] : memref<16x1024xf32, #tpu.memory_space<vmem>>, vector<16x1024xf32>
      %c0_12 = arith.constant 0 : index
      %c0_13 = arith.constant 0 : index
      %13 = vector.load %arg5[%c0_12, %c0_13] : memref<1x1024xf32, #tpu.memory_space<vmem>>, vector<1x1024xf32>
      %14 = vector.broadcast %13 : vector<1x1024xf32> to vector<16x1024xf32>
      %15 = arith.addf %12, %14 : vector<16x1024xf32>
      %16 = arith.truncf %15 : vector<16x1024xf32> to vector<16x1024xbf16>
      %c0_14 = arith.constant 0 : index
      %c0_15 = arith.constant 0 : index
      %17 = vector.load %arg6[%c0_14, %c0_15] : memref<16x1024xbf16, #tpu.memory_space<vmem>>, vector<16x1024xbf16>
      tpu.vector_store %arg6[%c0_14, %c0_15], %16 {strides = array<i32>} : memref<16x1024xbf16, #tpu.memory_space<vmem>>, vector<16x1024xbf16>,
    } else {
    }
    return
  }
  func.func @transform_0(%arg0: i32, %arg1: i32, %arg2: i32) -> (i32, i32) {
    %c0_i32 = arith.constant 0 : i32
    return %arg0, %arg2 : i32, i32
  }
  func.func @transform_1(%arg0: i32, %arg1: i32, %arg2: i32) -> (i32, i32) {
    %c0_i32 = arith.constant 0 : i32
    return %arg2, %arg1 : i32, i32
  }
  func.func @transform_2(%arg0: i32, %arg1: i32, %arg2: i32) -> (i32, i32) {
    %c0_i32 = arith.constant 0 : i32
    %c0_i32_0 = arith.constant 0 : i32
    return %c0_i32, %arg1 : i32, i32
  }
  func.func @transform_3(%arg0: i32, %arg1: i32, %arg2: i32) -> (i32, i32) {
    %c0_i32 = arith.constant 0 : i32
    return %arg0, %arg1 : i32, i32
  }
}

</mosaic_0001>

<llo_original>
// kernel: tpu_custom_call.1
$region0: #{tpu_custom_call.1}
  #allocation0 [shape = 'u32[]', space=smem, size = 0x4, offset = 0x4, fixed_abs, tag = 'smem constant byte address 0x4 - core index']
  #allocation1 [shape = 'u32[144,128]{1,0:T(1,128)}', space=vmem, size = 0x12000, scoped, tag = 'internal scratch']
  #allocation2 [shape = 'f32[16,1024]{1,0:T(8,128)}', space=vmem, size = 0x10000, scoped, tag = 'scratch operand']
  %s0 = inlined_call_operand.hbm [shape: bf16[16,512], index: 0, kind: input, shape index: {}]
  %s1 = inlined_call_operand.hbm [shape: bf16[512,1024], index: 1, kind: input, shape index: {}]
  %s2 = inlined_call_operand.hbm [shape: f32[1,1024], index: 2, kind: input, shape index: {}]
  %s3 = inlined_call_operand.hbm [shape: bf16[16,1024], index: 3, kind: output, shape index: {}]
  %s4 = sld [smem:[#allocation0]]
  $region42: #{tpu_custom_call.1} parent=0
    _
  %s6 = ssub.s32 1, %s4
  %s7 = scalar_select 0, %s6, %s4
  $region1: #{tpu_custom_call.1} parent=0
    #allocation3 [shape = 'u8[16384]{0}', space=vmem, size = 0x4000, scoped, tag = 'input window, operand 0, single buffered']
    #allocation4 [shape = 's32[1]{0}', space=sflag, size = 0x4, scoped, tag = 'scoped memory for tpu_custom_call.1']
    #allocation5 [shape = 's32[1]{0}', space=sflag, size = 0x4, scoped, tag = 'scoped memory for tpu_custom_call.1']
    #allocation6 [shape = 'u8[1048576]{0}', space=vmem, size = 0x100000, scoped, tag = 'input window, operand 1, single buffered']
    #allocation7 [shape = 's32[1]{0}', space=sflag, size = 0x4, scoped, tag = 'scoped memory for tpu_custom_call.1']
    #allocation8 [shape = 'u8[4096]{0}', space=vmem, size = 0x1000, scoped, tag = 'input window, operand 2, single buffered']
    #allocation9 [shape = 'u8[32768]{0}', space=vmem, size = 0x8000, scoped, tag = 'output window, operand 0, single buffered']
    %8 = vsyncpa [#allocation4], 0
    %9 = vsyncpa [#allocation7], 0
    %10 = vsyncpa [#allocation5], 0
    // Predicated region
    $region2: #{tpu_custom_call.1} parent=1 // pred_check
      _
    $region3: #{tpu_custom_call.1} parent=1 // pred_check_branch
      %12 = sbr.rel (0) target = $region5
    $region4: #{tpu_custom_call.1} parent=1 // pred_region
      %s14 = ssub.s32 512, 512
      %15 = vsyncadd [#allocation4], %s14
      %s16 = sshll.u32 [#allocation3], 4
      %s17 = int_to_ptr.vmem [resolvable:$true] %s16
      %22 = dma.hbm_to_vmem [thread:$0]  %s0, 512, %s17, [#allocation4], 256, 256, 16
    $region5: #{tpu_custom_call.1} parent=1 // pred_fallthru
      _
    // Predicated region
    $region6: #{tpu_custom_call.1} parent=1 // pred_check
      _
    $region7: #{tpu_custom_call.1} parent=1 // pred_check_branch
      %24 = sbr.rel (0) target = $region9
    $region8: #{tpu_custom_call.1} parent=1 // pred_region
      %s26 = ssub.s32 32768, 32768
      %27 = vsyncadd [#allocation7], %s26
      %s28 = sshll.u32 [#allocation6], 4
      %s29 = int_to_ptr.vmem [resolvable:$true] %s28
      %34 = dma.hbm_to_vmem [thread:$0]  %s1, 32768, %s29, [#allocation7], 512, 512, 32
    $region9: #{tpu_custom_call.1} parent=1 // pred_fallthru
      _
    // Predicated region
    $region10: #{tpu_custom_call.1} parent=1 // pred_check
      _
    $region11: #{tpu_custom_call.1} parent=1 // pred_check_branch
      %36 = sbr.rel (0) target = $region13
    $region12: #{tpu_custom_call.1} parent=1 // pred_region
      %s38 = ssub.s32 128, 128
      %39 = vsyncadd [#allocation7], %s38
      %s41 = sshll.u32 [#allocation8], 4
      %s42 = int_to_ptr.vmem [resolvable:$true] %s41
      %44 = dma.hbm_to_vmem [thread:$0]  %s2, 128, %s42, [#allocation7]
    $region13: #{tpu_custom_call.1} parent=1 // pred_fallthru
      _
    // Predicated region
    $region14: #{tpu_custom_call.1} parent=1 // pred_check
      _
    $region15: #{tpu_custom_call.1} parent=1 // pred_check_branch
      %46 = sbr.rel (0) target = $region17
    $region16: #{tpu_custom_call.1} parent=1 // pred_region
      %47 = dma.done [#allocation4], 512
    $region17: #{tpu_custom_call.1} parent=1 // pred_fallthru
      _
    // Predicated region
    $region18: #{tpu_custom_call.1} parent=1 // pred_check
      _
    $region19: #{tpu_custom_call.1} parent=1 // pred_check_branch
      %49 = sbr.rel (0) target = $region21
    $region20: #{tpu_custom_call.1} parent=1 // pred_region
      %50 = dma.done [#allocation7], 32768
    $region21: #{tpu_custom_call.1} parent=1 // pred_fallthru
      _
    // Predicated region
    $region22: #{tpu_custom_call.1} parent=1 // pred_check
      _
    $region23: #{tpu_custom_call.1} parent=1 // pred_check_branch
      %52 = sbr.rel (0) target = $region25
    $region24: #{tpu_custom_call.1} parent=1 // pred_region
      %53 = dma.done [#allocation7], 128
    $region25: #{tpu_custom_call.1} parent=1 // pred_fallthru
      _
    %p54 = scmp.eq.s32.totalorder 0, 0
    // Predicated region
    $region26: #{tpu_custom_call.1} parent=1 // pred_check
      %p55 = pneg %p54
    $region27: #{tpu_custom_call.1} parent=1 // pred_check_branch
      %57 = sbr.rel (%p55) target = $region29
    $region28: #{tpu_custom_call.1} parent=1 // pred_region
      %58 = vst [vmem:[#allocation2] sm:$0xff] 0.0
      %59 = vst [vmem:[#allocation2 + $0x8] sm:$0xff] 0.0
      %60 = vst [vmem:[#allocation2 + $0x10] sm:$0xff] 0.0
      %61 = vst [vmem:[#allocation2 + $0x18] sm:$0xff] 0.0
      %62 = vst [vmem:[#allocation2 + $0x20] sm:$0xff] 0.0
      %63 = vst [vmem:[#allocation2 + $0x28] sm:$0xff] 0.0
      %64 = vst [vmem:[#allocation2 + $0x30] sm:$0xff] 0.0
      %65 = vst [vmem:[#allocation2 + $0x38] sm:$0xff] 0.0
      %66 = vst [vmem:[#allocation2 + $0x40] sm:$0xff] 0.0
      %67 = vst [vmem:[#allocation2 + $0x48] sm:$0xff] 0.0
      %68 = vst [vmem:[#allocation2 + $0x50] sm:$0xff] 0.0
      %69 = vst [vmem:[#allocation2 + $0x58] sm:$0xff] 0.0
      %70 = vst [vmem:[#allocation2 + $0x60] sm:$0xff] 0.0
      %71 = vst [vmem:[#allocation2 + $0x68] sm:$0xff] 0.0
      %72 = vst [vmem:[#allocation2 + $0x70] sm:$0xff] 0.0
      %73 = vst [vmem:[#allocation2 + $0x78] sm:$0xff] 0.0
    $region29: #{tpu_custom_call.1} parent=1 // pred_fallthru
      _
    %v74 = vld [vmem:[#allocation2] sm:$0xff]
    %v75 = vld [vmem:[#allocation2 + $0x8] sm:$0xff]
    %v76 = vld [vmem:[#allocation2 + $0x10] sm:$0xff]
    %v77 = vld [vmem:[#allocation2 + $0x18] sm:$0xff]
    %v78 = vld [vmem:[#allocation2 + $0x20] sm:$0xff]
    %v79 = vld [vmem:[#allocation2 + $0x28] sm:$0xff]
    %v80 = vld [vmem:[#allocation2 + $0x30] sm:$0xff]
    %v81 = vld [vmem:[#allocation2 + $0x38] sm:$0xff]
    %v82 = vld [vmem:[#allocation2 + $0x40] sm:$0xff]
    %v83 = vld [vmem:[#allocation2 + $0x48] sm:$0xff]
    %v84 = vld [vmem:[#allocation2 + $0x50] sm:$0xff]
    %v85 = vld [vmem:[#allocation2 + $0x58] sm:$0xff]
    %v86 = vld [vmem:[#allocation2 + $0x60] sm:$0xff]
    %v87 = vld [vmem:[#allocation2 + $0x68] sm:$0xff]
    %v88 = vld [vmem:[#allocation2 + $0x70] sm:$0xff]
    %v89 = vld [vmem:[#allocation2 + $0x78] sm:$0xff]
    %v90 = vld [vmem:[#allocation3] sm:$0xff]
    %v91 = vld [vmem:[#allocation3 + $0x8] sm:$0xff]
    %v92 = vld [vmem:[#allocation3 + $0x10] sm:$0xff]
    %v93 = vld [vmem:[#allocation3 + $0x18] sm:$0xff]
    %v94 = vld [vmem:[#allocation6] sm:$0xff]
    %v95 = vld [vmem:[#allocation6 + $0x8] sm:$0xff]
    %v96 = vld [vmem:[#allocation6 + $0x10] sm:$0xff]
    %v97 = vld [vmem:[#allocation6 + $0x18] sm:$0xff]
    %v98 = vld [vmem:[#allocation6 + $0x20] sm:$0xff]
    %v99 = vld [vmem:[#allocation6 + $0x28] sm:$0xff]
    %v100 = vld [vmem:[#allocation6 + $0x30] sm:$0xff]
    %v101 = vld [vmem:[#allocation6 + $0x38] sm:$0xff]
    %v102 = vld [vmem:[#allocation6 + $0x40] sm:$0xff]
    %v103 = vld [vmem:[#allocation6 + $0x48] sm:$0xff]
    %v104 = vld [vmem:[#allocation6 + $0x50] sm:$0xff]
    %v105 = vld [vmem:[#allocation6 + $0x58] sm:$0xff]
    %v106 = vld [vmem:[#allocation6 + $0x60] sm:$0xff]
    %v107 = vld [vmem:[#allocation6 + $0x68] sm:$0xff]
    %v108 = vld [vmem:[#allocation6 + $0x70] sm:$0xff]
    %v109 = vld [vmem:[#allocation6 + $0x78] sm:$0xff]
    %v110 = vld [vmem:[#allocation6 + $0x80] sm:$0xff]
    %v111 = vld [vmem:[#allocation6 + $0x88] sm:$0xff]
    %v112 = vld [vmem:[#allocation6 + $0x90] sm:$0xff]
    %v113 = vld [vmem:[#allocation6 + $0x98] sm:$0xff]
    %v114 = vld [vmem:[#allocation6 + $0xa0] sm:$0xff]
    %v115 = vld [vmem:[#allocation6 + $0xa8] sm:$0xff]
    %v116 = vld [vmem:[#allocation6 + $0xb0] sm:$0xff]
    %v117 = vld [vmem:[#allocation6 + $0xb8] sm:$0xff]
    %v118 = vld [vmem:[#allocation6 + $0xc0] sm:$0xff]
    %v119 = vld [vmem:[#allocation6 + $0xc8] sm:$0xff]
    %v120 = vld [vmem:[#allocation6 + $0xd0] sm:$0xff]
    %v121 = vld [vmem:[#allocation6 + $0xd8] sm:$0xff]
    %v122 = vld [vmem:[#allocation6 + $0xe0] sm:$0xff]
    %v123 = vld [vmem:[#allocation6 + $0xe8] sm:$0xff]
    %v124 = vld [vmem:[#allocation6 + $0xf0] sm:$0xff]
    %v125 = vld [vmem:[#allocation6 + $0xf8] sm:$0xff]
    %v126 = vld [vmem:[#allocation6 + $0x100] sm:$0xff]
    %v127 = vld [vmem:[#allocation6 + $0x108] sm:$0xff]
    %v128 = vld [vmem:[#allocation6 + $0x110] sm:$0xff]
    %v129 = vld [vmem:[#allocation6 + $0x118] sm:$0xff]
    %v130 = vld [vmem:[#allocation6 + $0x120] sm:$0xff]
    %v131 = vld [vmem:[#allocation6 + $0x128] sm:$0xff]
    %v132 = vld [vmem:[#allocation6 + $0x130] sm:$0xff]
    %v133 = vld [vmem:[#allocation6 + $0x138] sm:$0xff]
    %v134 = vld [vmem:[#allocation6 + $0x140] sm:$0xff]
    %v135 = vld [vmem:[#allocation6 + $0x148] sm:$0xff]
    %v136 = vld [vmem:[#allocation6 + $0x150] sm:$0xff]
    %v137 = vld [vmem:[#allocation6 + $0x158] sm:$0xff]
    %v138 = vld [vmem:[#allocation6 + $0x160] sm:$0xff]
    %v139 = vld [vmem:[#allocation6 + $0x168] sm:$0xff]
    %v140 = vld [vmem:[#allocation6 + $0x170] sm:$0xff]
    %v141 = vld [vmem:[#allocation6 + $0x178] sm:$0xff]
    %v142 = vld [vmem:[#allocation6 + $0x180] sm:$0xff]
    %v143 = vld [vmem:[#allocation6 + $0x188] sm:$0xff]
    %v144 = vld [vmem:[#allocation6 + $0x190] sm:$0xff]
    %v145 = vld [vmem:[#allocation6 + $0x198] sm:$0xff]
    %v146 = vld [vmem:[#allocation6 + $0x1a0] sm:$0xff]
    %v147 = vld [vmem:[#allocation6 + $0x1a8] sm:$0xff]
    %v148 = vld [vmem:[#allocation6 + $0x1b0] sm:$0xff]
    %v149 = vld [vmem:[#allocation6 + $0x1b8] sm:$0xff]
    %v150 = vld [vmem:[#allocation6 + $0x1c0] sm:$0xff]
    %v151 = vld [vmem:[#allocation6 + $0x1c8] sm:$0xff]
    %v152 = vld [vmem:[#allocation6 + $0x1d0] sm:$0xff]
    %v153 = vld [vmem:[#allocation6 + $0x1d8] sm:$0xff]
    %v154 = vld [vmem:[#allocation6 + $0x1e0] sm:$0xff]
    %v155 = vld [vmem:[#allocation6 + $0x1e8] sm:$0xff]
    %v156 = vld [vmem:[#allocation6 + $0x1f0] sm:$0xff]
    %v157 = vld [vmem:[#allocation6 + $0x1f8] sm:$0xff]
    %v158 = vld [vmem:[#allocation6 + $0x200] sm:$0xff]
    %v159 = vld [vmem:[#allocation6 + $0x208] sm:$0xff]
    %v160 = vld [vmem:[#allocation6 + $0x210] sm:$0xff]
    %v161 = vld [vmem:[#allocation6 + $0x218] sm:$0xff]
    %v162 = vld [vmem:[#allocation6 + $0x220] sm:$0xff]
    %v163 = vld [vmem:[#allocation6 + $0x228] sm:$0xff]
    %v164 = vld [vmem:[#allocation6 + $0x230] sm:$0xff]
    %v165 = vld [vmem:[#allocation6 + $0x238] sm:$0xff]
    %v166 = vld [vmem:[#allocation6 + $0x240] sm:$0xff]
    %v167 = vld [vmem:[#allocation6 + $0x248] sm:$0xff]
    %v168 = vld [vmem:[#allocation6 + $0x250] sm:$0xff]
    %v169 = vld [vmem:[#allocation6 + $0x258] sm:$0xff]
    %v170 = vld [vmem:[#allocation6 + $0x260] sm:$0xff]
    %v171 = vld [vmem:[#allocation6 + $0x268] sm:$0xff]
    %v172 = vld [vmem:[#allocation6 + $0x270] sm:$0xff]
    %v173 = vld [vmem:[#allocation6 + $0x278] sm:$0xff]
    %v174 = vld [vmem:[#allocation6 + $0x280] sm:$0xff]
    %v175 = vld [vmem:[#allocation6 + $0x288] sm:$0xff]
    %v176 = vld [vmem:[#allocation6 + $0x290] sm:$0xff]
    %v177 = vld [vmem:[#allocation6 + $0x298] sm:$0xff]
    %v178 = vld [vmem:[#allocation6 + $0x2a0] sm:$0xff]
    %v179 = vld [vmem:[#allocation6 + $0x2a8] sm:$0xff]
    %v180 = vld [vmem:[#allocation6 + $0x2b0] sm:$0xff]
    %v181 = vld [vmem:[#allocation6 + $0x2b8] sm:$0xff]
    %v182 = vld [vmem:[#allocation6 + $0x2c0] sm:$0xff]
    %v183 = vld [vmem:[#allocation6 + $0x2c8] sm:$0xff]
    %v184 = vld [vmem:[#allocation6 + $0x2d0] sm:$0xff]
    %v185 = vld [vmem:[#allocation6 + $0x2d8] sm:$0xff]
    %v186 = vld [vmem:[#allocation6 + $0x2e0] sm:$0xff]
    %v187 = vld [vmem:[#allocation6 + $0x2e8] sm:$0xff]
    %v188 = vld [vmem:[#allocation6 + $0x2f0] sm:$0xff]
    %v189 = vld [vmem:[#allocation6 + $0x2f8] sm:$0xff]
    %v190 = vld [vmem:[#allocation6 + $0x300] sm:$0xff]
    %v191 = vld [vmem:[#allocation6 + $0x308] sm:$0xff]
    %v192 = vld [vmem:[#allocation6 + $0x310] sm:$0xff]
    %v193 = vld [vmem:[#allocation6 + $0x318] sm:$0xff]
    %v194 = vld [vmem:[#allocation6 + $0x320] sm:$0xff]
    %v195 = vld [vmem:[#allocation6 + $0x328] sm:$0xff]
    %v196 = vld [vmem:[#allocation6 + $0x330] sm:$0xff]
    %v197 = vld [vmem:[#allocation6 + $0x338] sm:$0xff]
    %v198 = vld [vmem:[#allocation6 + $0x340] sm:$0xff]
    %v199 = vld [vmem:[#allocation6 + $0x348] sm:$0xff]
    %v200 = vld [vmem:[#allocation6 + $0x350] sm:$0xff]
    %v201 = vld [vmem:[#allocation6 + $0x358] sm:$0xff]
    %v202 = vld [vmem:[#allocation6 + $0x360] sm:$0xff]
    %v203 = vld [vmem:[#allocation6 + $0x368] sm:$0xff]
    %v204 = vld [vmem:[#allocation6 + $0x370] sm:$0xff]
    %v205 = vld [vmem:[#allocation6 + $0x378] sm:$0xff]
    %v206 = vld [vmem:[#allocation6 + $0x380] sm:$0xff]
    %v207 = vld [vmem:[#allocation6 + $0x388] sm:$0xff]
    %v208 = vld [vmem:[#allocation6 + $0x390] sm:$0xff]
    %v209 = vld [vmem:[#allocation6 + $0x398] sm:$0xff]
    %v210 = vld [vmem:[#allocation6 + $0x3a0] sm:$0xff]
    %v211 = vld [vmem:[#allocation6 + $0x3a8] sm:$0xff]
    %v212 = vld [vmem:[#allocation6 + $0x3b0] sm:$0xff]
    %v213 = vld [vmem:[#allocation6 + $0x3b8] sm:$0xff]
    %v214 = vld [vmem:[#allocation6 + $0x3c0] sm:$0xff]
    %v215 = vld [vmem:[#allocation6 + $0x3c8] sm:$0xff]
    %v216 = vld [vmem:[#allocation6 + $0x3d0] sm:$0xff]
    %v217 = vld [vmem:[#allocation6 + $0x3d8] sm:$0xff]
    %v218 = vld [vmem:[#allocation6 + $0x3e0] sm:$0xff]
    %v219 = vld [vmem:[#allocation6 + $0x3e8] sm:$0xff]
    %v220 = vld [vmem:[#allocation6 + $0x3f0] sm:$0xff]
    %v221 = vld [vmem:[#allocation6 + $0x3f8] sm:$0xff]
    %v222 = vld [vmem:[#allocation6 + $0x400] sm:$0xff]
    %v223 = vld [vmem:[#allocation6 + $0x408] sm:$0xff]
    %v224 = vld [vmem:[#allocation6 + $0x410] sm:$0xff]
    %v225 = vld [vmem:[#allocation6 + $0x418] sm:$0xff]
    %v226 = vld [vmem:[#allocation6 + $0x420] sm:$0xff]
    %v227 = vld [vmem:[#allocation6 + $0x428] sm:$0xff]
    %v228 = vld [vmem:[#allocation6 + $0x430] sm:$0xff]
    %v229 = vld [vmem:[#allocation6 + $0x438] sm:$0xff]
    %v230 = vld [vmem:[#allocation6 + $0x440] sm:$0xff]
    %v231 = vld [vmem:[#allocation6 + $0x448] sm:$0xff]
    %v232 = vld [vmem:[#allocation6 + $0x450] sm:$0xff]
    %v233 = vld [vmem:[#allocation6 + $0x458] sm:$0xff]
    %v234 = vld [vmem:[#allocation6 + $0x460] sm:$0xff]
    %v235 = vld [vmem:[#allocation6 + $0x468] sm:$0xff]
    %v236 = vld [vmem:[#allocation6 + $0x470] sm:$0xff]
    %v237 = vld [vmem:[#allocation6 + $0x478] sm:$0xff]
    %v238 = vld [vmem:[#allocation6 + $0x480] sm:$0xff]
    %v239 = vld [vmem:[#allocation6 + $0x488] sm:$0xff]
    %v240 = vld [vmem:[#allocation6 + $0x490] sm:$0xff]
    %v241 = vld [vmem:[#allocation6 + $0x498] sm:$0xff]
    %v242 = vld [vmem:[#allocation6 + $0x4a0] sm:$0xff]
    %v243 = vld [vmem:[#allocation6 + $0x4a8] sm:$0xff]
    %v244 = vld [vmem:[#allocation6 + $0x4b0] sm:$0xff]
    %v245 = vld [vmem:[#allocation6 + $0x4b8] sm:$0xff]
    %v246 = vld [vmem:[#allocation6 + $0x4c0] sm:$0xff]
    %v247 = vld [vmem:[#allocation6 + $0x4c8] sm:$0xff]
    %v248 = vld [vmem:[#allocation6 + $0x4d0] sm:$0xff]
    %v249 = vld [vmem:[#allocation6 + $0x4d8] sm:$0xff]
    %v250 = vld [vmem:[#allocation6 + $0x4e0] sm:$0xff]
    %v251 = vld [vmem:[#allocation6 + $0x4e8] sm:$0xff]
    %v252 = vld [vmem:[#allocation6 + $0x4f0] sm:$0xff]
    %v253 = vld [vmem:[#allocation6 + $0x4f8] sm:$0xff]
    %v254 = vld [vmem:[#allocation6 + $0x500] sm:$0xff]
    %v255 = vld [vmem:[#allocation6 + $0x508] sm:$0xff]
    %v256 = vld [vmem:[#allocation6 + $0x510] sm:$0xff]
    %v257 = vld [vmem:[#allocation6 + $0x518] sm:$0xff]
    %v258 = vld [vmem:[#allocation6 + $0x520] sm:$0xff]
    %v259 = vld [vmem:[#allocation6 + $0x528] sm:$0xff]
    %v260 = vld [vmem:[#allocation6 + $0x530] sm:$0xff]
    %v261 = vld [vmem:[#allocation6 + $0x538] sm:$0xff]
    %v262 = vld [vmem:[#allocation6 + $0x540] sm:$0xff]
    %v263 = vld [vmem:[#allocation6 + $0x548] sm:$0xff]
    %v264 = vld [vmem:[#allocation6 + $0x550] sm:$0xff]
    %v265 = vld [vmem:[#allocation6 + $0x558] sm:$0xff]
    %v266 = vld [vmem:[#allocation6 + $0x560] sm:$0xff]
    %v267 = vld [vmem:[#allocation6 + $0x568] sm:$0xff]
    %v268 = vld [vmem:[#allocation6 + $0x570] sm:$0xff]
    %v269 = vld [vmem:[#allocation6 + $0x578] sm:$0xff]
    %v270 = vld [vmem:[#allocation6 + $0x580] sm:$0xff]
    %v271 = vld [vmem:[#allocation6 + $0x588] sm:$0xff]
    %v272 = vld [vmem:[#allocation6 + $0x590] sm:$0xff]
    %v273 = vld [vmem:[#allocation6 + $0x598] sm:$0xff]
    %v274 = vld [vmem:[#allocation6 + $0x5a0] sm:$0xff]
    %v275 = vld [vmem:[#allocation6 + $0x5a8] sm:$0xff]
    %v276 = vld [vmem:[#allocation6 + $0x5b0] sm:$0xff]
    %v277 = vld [vmem:[#allocation6 + $0x5b8] sm:$0xff]
    %v278 = vld [vmem:[#allocation6 + $0x5c0] sm:$0xff]
    %v279 = vld [vmem:[#allocation6 + $0x5c8] sm:$0xff]
    %v280 = vld [vmem:[#allocation6 + $0x5d0] sm:$0xff]
    %v281 = vld [vmem:[#allocation6 + $0x5d8] sm:$0xff]
    %v282 = vld [vmem:[#allocation6 + $0x5e0] sm:$0xff]
    %v283 = vld [vmem:[#allocation6 + $0x5e8] sm:$0xff]
    %v284 = vld [vmem:[#allocation6 + $0x5f0] sm:$0xff]
    %v285 = vld [vmem:[#allocation6 + $0x5f8] sm:$0xff]
    %v286 = vld [vmem:[#allocation6 + $0x600] sm:$0xff]
    %v287 = vld [vmem:[#allocation6 + $0x608] sm:$0xff]
    %v288 = vld [vmem:[#allocation6 + $0x610] sm:$0xff]
    %v289 = vld [vmem:[#allocation6 + $0x618] sm:$0xff]
    %v290 = vld [vmem:[#allocation6 + $0x620] sm:$0xff]
    %v291 = vld [vmem:[#allocation6 + $0x628] sm:$0xff]
    %v292 = vld [vmem:[#allocation6 + $0x630] sm:$0xff]
    %v293 = vld [vmem:[#allocation6 + $0x638] sm:$0xff]
    %v294 = vld [vmem:[#allocation6 + $0x640] sm:$0xff]
    %v295 = vld [vmem:[#allocation6 + $0x648] sm:$0xff]
    %v296 = vld [vmem:[#allocation6 + $0x650] sm:$0xff]
    %v297 = vld [vmem:[#allocation6 + $0x658] sm:$0xff]
    %v298 = vld [vmem:[#allocation6 + $0x660] sm:$0xff]
    %v299 = vld [vmem:[#allocation6 + $0x668] sm:$0xff]
    %v300 = vld [vmem:[#allocation6 + $0x670] sm:$0xff]
    %v301 = vld [vmem:[#allocation6 + $0x678] sm:$0xff]
    %v302 = vld [vmem:[#allocation6 + $0x680] sm:$0xff]
    %v303 = vld [vmem:[#allocation6 + $0x688] sm:$0xff]
    %v304 = vld [vmem:[#allocation6 + $0x690] sm:$0xff]
    %v305 = vld [vmem:[#allocation6 + $0x698] sm:$0xff]
    %v306 = vld [vmem:[#allocation6 + $0x6a0] sm:$0xff]
    %v307 = vld [vmem:[#allocation6 + $0x6a8] sm:$0xff]
    %v308 = vld [vmem:[#allocation6 + $0x6b0] sm:$0xff]
    %v309 = vld [vmem:[#allocation6 + $0x6b8] sm:$0xff]
    %v310 = vld [vmem:[#allocation6 + $0x6c0] sm:$0xff]
    %v311 = vld [vmem:[#allocation6 + $0x6c8] sm:$0xff]
    %v312 = vld [vmem:[#allocation6 + $0x6d0] sm:$0xff]
    %v313 = vld [vmem:[#allocation6 + $0x6d8] sm:$0xff]
    %v314 = vld [vmem:[#allocation6 + $0x6e0] sm:$0xff]
    %v315 = vld [vmem:[#allocation6 + $0x6e8] sm:$0xff]
    %v316 = vld [vmem:[#allocation6 + $0x6f0] sm:$0xff]
    %v317 = vld [vmem:[#allocation6 + $0x6f8] sm:$0xff]
    %v318 = vld [vmem:[#allocation6 + $0x700] sm:$0xff]
    %v319 = vld [vmem:[#allocation6 + $0x708] sm:$0xff]
    %v320 = vld [vmem:[#allocation6 + $0x710] sm:$0xff]
    %v321 = vld [vmem:[#allocation6 + $0x718] sm:$0xff]
    %v322 = vld [vmem:[#allocation6 + $0x720] sm:$0xff]
    %v323 = vld [vmem:[#allocation6 + $0x728] sm:$0xff]
    %v324 = vld [vmem:[#allocation6 + $0x730] sm:$0xff]
    %v325 = vld [vmem:[#allocation6 + $0x738] sm:$0xff]
    %v326 = vld [vmem:[#allocation6 + $0x740] sm:$0xff]
    %v327 = vld [vmem:[#allocation6 + $0x748] sm:$0xff]
    %v328 = vld [vmem:[#allocation6 + $0x750] sm:$0xff]
    %v329 = vld [vmem:[#allocation6 + $0x758] sm:$0xff]
    %v330 = vld [vmem:[#allocation6 + $0x760] sm:$0xff]
    %v331 = vld [vmem:[#allocation6 + $0x768] sm:$0xff]
    %v332 = vld [vmem:[#allocation6 + $0x770] sm:$0xff]
    %v333 = vld [vmem:[#allocation6 + $0x778] sm:$0xff]
    %v334 = vld [vmem:[#allocation6 + $0x780] sm:$0xff]
    %v335 = vld [vmem:[#allocation6 + $0x788] sm:$0xff]
    %v336 = vld [vmem:[#allocation6 + $0x790] sm:$0xff]
    %v337 = vld [vmem:[#allocation6 + $0x798] sm:$0xff]
    %v338 = vld [vmem:[#allocation6 + $0x7a0] sm:$0xff]
    %v339 = vld [vmem:[#allocation6 + $0x7a8] sm:$0xff]
    %v340 = vld [vmem:[#allocation6 + $0x7b0] sm:$0xff]
    %v341 = vld [vmem:[#allocation6 + $0x7b8] sm:$0xff]
    %v342 = vld [vmem:[#allocation6 + $0x7c0] sm:$0xff]
    %v343 = vld [vmem:[#allocation6 + $0x7c8] sm:$0xff]
    %v344 = vld [vmem:[#allocation6 + $0x7d0] sm:$0xff]
    %v345 = vld [vmem:[#allocation6 + $0x7d8] sm:$0xff]
    %v346 = vld [vmem:[#allocation6 + $0x7e0] sm:$0xff]
    %v347 = vld [vmem:[#allocation6 + $0x7e8] sm:$0xff]
    %v348 = vld [vmem:[#allocation6 + $0x7f0] sm:$0xff]
    %v349 = vld [vmem:[#allocation6 + $0x7f8] sm:$0xff]
    %v354 = vunpack.c.l.b16 %v90
    %v355 = vunpack.c.h.b16 %v90
    %v356 = vunpack.c.l.b16 %v91
    %v357 = vunpack.c.h.b16 %v91
    %v358 = vunpack.c.l.b16 %v92
    %v359 = vunpack.c.h.b16 %v92
    %v360 = vunpack.c.l.b16 %v93
    %v361 = vunpack.c.h.b16 %v93
    %v362 = vpack.c.b16 %v358, %v354
    %v363 = vpack.c.b16 %v359, %v355
    %v364 = vpack.c.b16 %v360, %v356
    %v365 = vpack.c.b16 %v361, %v357
    %v626 = vunpack.c.l.b16 %v94
    %v627 = vunpack.c.h.b16 %v94
    %v628 = vunpack.c.l.b16 %v95
    %v629 = vunpack.c.h.b16 %v95
    %v630 = vunpack.c.l.b16 %v96
    %v631 = vunpack.c.h.b16 %v96
    %v632 = vunpack.c.l.b16 %v97
    %v633 = vunpack.c.h.b16 %v97
    %v634 = vunpack.c.l.b16 %v98
    %v635 = vunpack.c.h.b16 %v98
    %v636 = vunpack.c.l.b16 %v99
    %v637 = vunpack.c.h.b16 %v99
    %v638 = vunpack.c.l.b16 %v100
    %v639 = vunpack.c.h.b16 %v100
    %v640 = vunpack.c.l.b16 %v101
    %v641 = vunpack.c.h.b16 %v101
    %v642 = vunpack.c.l.b16 %v102
    %v643 = vunpack.c.h.b16 %v102
    %v644 = vunpack.c.l.b16 %v103
    %v645 = vunpack.c.h.b16 %v103
    %v646 = vunpack.c.l.b16 %v104
    %v647 = vunpack.c.h.b16 %v104
    %v648 = vunpack.c.l.b16 %v105
    %v649 = vunpack.c.h.b16 %v105
    %v650 = vunpack.c.l.b16 %v106
    %v651 = vunpack.c.h.b16 %v106
    %v652 = vunpack.c.l.b16 %v107
    %v653 = vunpack.c.h.b16 %v107
    %v654 = vunpack.c.l.b16 %v108
    %v655 = vunpack.c.h.b16 %v108
    %v656 = vunpack.c.l.b16 %v109
    %v657 = vunpack.c.h.b16 %v109
    %v658 = vunpack.c.l.b16 %v110
    %v659 = vunpack.c.h.b16 %v110
    %v660 = vunpack.c.l.b16 %v111
    %v661 = vunpack.c.h.b16 %v111
    %v662 = vunpack.c.l.b16 %v112
    %v663 = vunpack.c.h.b16 %v112
    %v664 = vunpack.c.l.b16 %v113
    %v665 = vunpack.c.h.b16 %v113
    %v666 = vunpack.c.l.b16 %v114
    %v667 = vunpack.c.h.b16 %v114
    %v668 = vunpack.c.l.b16 %v115
    %v669 = vunpack.c.h.b16 %v115
    %v670 = vunpack.c.l.b16 %v116
    %v671 = vunpack.c.h.b16 %v116
    %v672 = vunpack.c.l.b16 %v117
    %v673 = vunpack.c.h.b16 %v117
    %v674 = vunpack.c.l.b16 %v118
    %v675 = vunpack.c.h.b16 %v118
    %v676 = vunpack.c.l.b16 %v119
    %v677 = vunpack.c.h.b16 %v119
    %v678 = vunpack.c.l.b16 %v120
    %v679 = vunpack.c.h.b16 %v120
    %v680 = vunpack.c.l.b16 %v121
    %v681 = vunpack.c.h.b16 %v121
    %v682 = vunpack.c.l.b16 %v122
    %v683 = vunpack.c.h.b16 %v122
    %v684 = vunpack.c.l.b16 %v123
    %v685 = vunpack.c.h.b16 %v123
    %v686 = vunpack.c.l.b16 %v124
    %v687 = vunpack.c.h.b16 %v124
    %v688 = vunpack.c.l.b16 %v125
    %v689 = vunpack.c.h.b16 %v125
    %v690 = vunpack.c.l.b16 %v126
    %v691 = vunpack.c.h.b16 %v126
    %v692 = vunpack.c.l.b16 %v127
    %v693 = vunpack.c.h.b16 %v127
    %v694 = vunpack.c.l.b16 %v128
    %v695 = vunpack.c.h.b16 %v128
    %v696 = vunpack.c.l.b16 %v129
    %v697 = vunpack.c.h.b16 %v129
    %v698 = vunpack.c.l.b16 %v130
    %v699 = vunpack.c.h.b16 %v130
    %v700 = vunpack.c.l.b16 %v131
    %v701 = vunpack.c.h.b16 %v131
    %v702 = vunpack.c.l.b16 %v132
    %v703 = vunpack.c.h.b16 %v132
    %v704 = vunpack.c.l.b16 %v133
    %v705 = vunpack.c.h.b16 %v133
    %v706 = vunpack.c.l.b16 %v134
    %v707 = vunpack.c.h.b16 %v134
    %v708 = vunpack.c.l.b16 %v135
    %v709 = vunpack.c.h.b16 %v135
    %v710 = vunpack.c.l.b16 %v136
    %v711 = vunpack.c.h.b16 %v136
    %v712 = vunpack.c.l.b16 %v137
    %v713 = vunpack.c.h.b16 %v137
    %v714 = vunpack.c.l.b16 %v138
    %v715 = vunpack.c.h.b16 %v138
    %v716 = vunpack.c.l.b16 %v139
    %v717 = vunpack.c.h.b16 %v139
    %v718 = vunpack.c.l.b16 %v140
    %v719 = vunpack.c.h.b16 %v140
    %v720 = vunpack.c.l.b16 %v141
    %v721 = vunpack.c.h.b16 %v141
    %v722 = vunpack.c.l.b16 %v142
    %v723 = vunpack.c.h.b16 %v142
    %v724 = vunpack.c.l.b16 %v143
    %v725 = vunpack.c.h.b16 %v143
    %v726 = vunpack.c.l.b16 %v144
    %v727 = vunpack.c.h.b16 %v144
    %v728 = vunpack.c.l.b16 %v145
    %v729 = vunpack.c.h.b16 %v145
    %v730 = vunpack.c.l.b16 %v146
    %v731 = vunpack.c.h.b16 %v146
    %v732 = vunpack.c.l.b16 %v147
    %v733 = vunpack.c.h.b16 %v147
    %v734 = vunpack.c.l.b16 %v148
    %v735 = vunpack.c.h.b16 %v148
    %v736 = vunpack.c.l.b16 %v149
    %v737 = vunpack.c.h.b16 %v149
    %v738 = vunpack.c.l.b16 %v150
    %v739 = vunpack.c.h.b16 %v150
    %v740 = vunpack.c.l.b16 %v151
    %v741 = vunpack.c.h.b16 %v151
    %v742 = vunpack.c.l.b16 %v152
    %v743 = vunpack.c.h.b16 %v152
    %v744 = vunpack.c.l.b16 %v153
    %v745 = vunpack.c.h.b16 %v153
    %v746 = vunpack.c.l.b16 %v154
    %v747 = vunpack.c.h.b16 %v154
    %v748 = vunpack.c.l.b16 %v155
    %v749 = vunpack.c.h.b16 %v155
    %v750 = vunpack.c.l.b16 %v156
    %v751 = vunpack.c.h.b16 %v156
    %v752 = vunpack.c.l.b16 %v157
    %v753 = vunpack.c.h.b16 %v157
    %v754 = vunpack.c.l.b16 %v158
    %v755 = vunpack.c.h.b16 %v158
    %v756 = vunpack.c.l.b16 %v159
    %v757 = vunpack.c.h.b16 %v159
    %v758 = vunpack.c.l.b16 %v160
    %v759 = vunpack.c.h.b16 %v160
    %v760 = vunpack.c.l.b16 %v161
    %v761 = vunpack.c.h.b16 %v161
    %v762 = vunpack.c.l.b16 %v162
    %v763 = vunpack.c.h.b16 %v162
    %v764 = vunpack.c.l.b16 %v163
    %v765 = vunpack.c.h.b16 %v163
    %v766 = vunpack.c.l.b16 %v164
    %v767 = vunpack.c.h.b16 %v164
    %v768 = vunpack.c.l.b16 %v165
    %v769 = vunpack.c.h.b16 %v165
    %v770 = vunpack.c.l.b16 %v166
    %v771 = vunpack.c.h.b16 %v166
    %v772 = vunpack.c.l.b16 %v167
    %v773 = vunpack.c.h.b16 %v167
    %v774 = vunpack.c.l.b16 %v168
    %v775 = vunpack.c.h.b16 %v168
    %v776 = vunpack.c.l.b16 %v169
    %v777 = vunpack.c.h.b16 %v169
    %v778 = vunpack.c.l.b16 %v170
    %v779 = vunpack.c.h.b16 %v170
    %v780 = vunpack.c.l.b16 %v171
    %v781 = vunpack.c.h.b16 %v171
    %v782 = vunpack.c.l.b16 %v172
    %v783 = vunpack.c.h.b16 %v172
    %v784 = vunpack.c.l.b16 %v173
    %v785 = vunpack.c.h.b16 %v173
    %v786 = vunpack.c.l.b16 %v174
    %v787 = vunpack.c.h.b16 %v174
    %v788 = vunpack.c.l.b16 %v175
    %v789 = vunpack.c.h.b16 %v175
    %v790 = vunpack.c.l.b16 %v176
    %v791 = vunpack.c.h.b16 %v176
    %v792 = vunpack.c.l.b16 %v177
    %v793 = vunpack.c.h.b16 %v177
    %v794 = vunpack.c.l.b16 %v178
    %v795 = vunpack.c.h.b16 %v178
    %v796 = vunpack.c.l.b16 %v179
    %v797 = vunpack.c.h.b16 %v179
    %v798 = vunpack.c.l.b16 %v180
    %v799 = vunpack.c.h.b16 %v180
    %v800 = vunpack.c.l.b16 %v181
    %v801 = vunpack.c.h.b16 %v181
    %v802 = vunpack.c.l.b16 %v182
    %v803 = vunpack.c.h.b16 %v182
    %v804 = vunpack.c.l.b16 %v183
    %v805 = vunpack.c.h.b16 %v183
    %v806 = vunpack.c.l.b16 %v184
    %v807 = vunpack.c.h.b16 %v184
    %v808 = vunpack.c.l.b16 %v185
    %v809 = vunpack.c.h.b16 %v185
    %v810 = vunpack.c.l.b16 %v186
    %v811 = vunpack.c.h.b16 %v186
    %v812 = vunpack.c.l.b16 %v187
    %v813 = vunpack.c.h.b16 %v187
    %v814 = vunpack.c.l.b16 %v188
    %v815 = vunpack.c.h.b16 %v188
    %v816 = vunpack.c.l.b16 %v189
    %v817 = vunpack.c.h.b16 %v189
    %v818 = vunpack.c.l.b16 %v190
    %v819 = vunpack.c.h.b16 %v190
    %v820 = vunpack.c.l.b16 %v191
    %v821 = vunpack.c.h.b16 %v191
    %v822 = vunpack.c.l.b16 %v192
    %v823 = vunpack.c.h.b16 %v192
    %v824 = vunpack.c.l.b16 %v193
    %v825 = vunpack.c.h.b16 %v193
    %v826 = vunpack.c.l.b16 %v194
    %v827 = vunpack.c.h.b16 %v194
    %v828 = vunpack.c.l.b16 %v195
    %v829 = vunpack.c.h.b16 %v195
    %v830 = vunpack.c.l.b16 %v196
    %v831 = vunpack.c.h.b16 %v196
    %v832 = vunpack.c.l.b16 %v197
    %v833 = vunpack.c.h.b16 %v197
    %v834 = vunpack.c.l.b16 %v198
    %v835 = vunpack.c.h.b16 %v198
    %v836 = vunpack.c.l.b16 %v199
    %v837 = vunpack.c.h.b16 %v199
    %v838 = vunpack.c.l.b16 %v200
    %v839 = vunpack.c.h.b16 %v200
    %v840 = vunpack.c.l.b16 %v201
    %v841 = vunpack.c.h.b16 %v201
    %v842 = vunpack.c.l.b16 %v202
    %v843 = vunpack.c.h.b16 %v202
    %v844 = vunpack.c.l.b16 %v203
    %v845 = vunpack.c.h.b16 %v203
    %v846 = vunpack.c.l.b16 %v204
    %v847 = vunpack.c.h.b16 %v204
    %v848 = vunpack.c.l.b16 %v205
    %v849 = vunpack.c.h.b16 %v205
    %v850 = vunpack.c.l.b16 %v206
    %v851 = vunpack.c.h.b16 %v206
    %v852 = vunpack.c.l.b16 %v207
    %v853 = vunpack.c.h.b16 %v207
    %v854 = vunpack.c.l.b16 %v208
    %v855 = vunpack.c.h.b16 %v208
    %v856 = vunpack.c.l.b16 %v209
    %v857 = vunpack.c.h.b16 %v209
    %v858 = vunpack.c.l.b16 %v210
    %v859 = vunpack.c.h.b16 %v210
    %v860 = vunpack.c.l.b16 %v211
    %v861 = vunpack.c.h.b16 %v211
    %v862 = vunpack.c.l.b16 %v212
    %v863 = vunpack.c.h.b16 %v212
    %v864 = vunpack.c.l.b16 %v213
    %v865 = vunpack.c.h.b16 %v213
    %v866 = vunpack.c.l.b16 %v214
    %v867 = vunpack.c.h.b16 %v214
    %v868 = vunpack.c.l.b16 %v215
    %v869 = vunpack.c.h.b16 %v215
    %v870 = vunpack.c.l.b16 %v216
    %v871 = vunpack.c.h.b16 %v216
    %v872 = vunpack.c.l.b16 %v217
    %v873 = vunpack.c.h.b16 %v217
    %v874 = vunpack.c.l.b16 %v218
    %v875 = vunpack.c.h.b16 %v218
    %v876 = vunpack.c.l.b16 %v219
    %v877 = vunpack.c.h.b16 %v219
    %v878 = vunpack.c.l.b16 %v220
    %v879 = vunpack.c.h.b16 %v220
    %v880 = vunpack.c.l.b16 %v221
    %v881 = vunpack.c.h.b16 %v221
    %v882 = vunpack.c.l.b16 %v222
    %v883 = vunpack.c.h.b16 %v222
    %v884 = vunpack.c.l.b16 %v223
    %v885 = vunpack.c.h.b16 %v223
    %v886 = vunpack.c.l.b16 %v224
    %v887 = vunpack.c.h.b16 %v224
    %v888 = vunpack.c.l.b16 %v225
    %v889 = vunpack.c.h.b16 %v225
    %v890 = vunpack.c.l.b16 %v226
    %v891 = vunpack.c.h.b16 %v226
    %v892 = vunpack.c.l.b16 %v227
    %v893 = vunpack.c.h.b16 %v227
    %v894 = vunpack.c.l.b16 %v228
    %v895 = vunpack.c.h.b16 %v228
    %v896 = vunpack.c.l.b16 %v229
    %v897 = vunpack.c.h.b16 %v229
    %v898 = vunpack.c.l.b16 %v230
    %v899 = vunpack.c.h.b16 %v230
    %v900 = vunpack.c.l.b16 %v231
    %v901 = vunpack.c.h.b16 %v231
    %v902 = vunpack.c.l.b16 %v232
    %v903 = vunpack.c.h.b16 %v232
    %v904 = vunpack.c.l.b16 %v233
    %v905 = vunpack.c.h.b16 %v233
    %v906 = vunpack.c.l.b16 %v234
    %v907 = vunpack.c.h.b16 %v234
    %v908 = vunpack.c.l.b16 %v235
    %v909 = vunpack.c.h.b16 %v235
    %v910 = vunpack.c.l.b16 %v236
    %v911 = vunpack.c.h.b16 %v236
    %v912 = vunpack.c.l.b16 %v237
    %v913 = vunpack.c.h.b16 %v237
    %v914 = vunpack.c.l.b16 %v238
    %v915 = vunpack.c.h.b16 %v238
    %v916 = vunpack.c.l.b16 %v239
    %v917 = vunpack.c.h.b16 %v239
    %v918 = vunpack.c.l.b16 %v240
    %v919 = vunpack.c.h.b16 %v240
    %v920 = vunpack.c.l.b16 %v241
    %v921 = vunpack.c.h.b16 %v241
    %v922 = vunpack.c.l.b16 %v242
    %v923 = vunpack.c.h.b16 %v242
    %v924 = vunpack.c.l.b16 %v243
    %v925 = vunpack.c.h.b16 %v243
    %v926 = vunpack.c.l.b16 %v244
    %v927 = vunpack.c.h.b16 %v244
    %v928 = vunpack.c.l.b16 %v245
    %v929 = vunpack.c.h.b16 %v245
    %v930 = vunpack.c.l.b16 %v246
    %v931 = vunpack.c.h.b16 %v246
    %v932 = vunpack.c.l.b16 %v247
    %v933 = vunpack.c.h.b16 %v247
    %v934 = vunpack.c.l.b16 %v248
    %v935 = vunpack.c.h.b16 %v248
    %v936 = vunpack.c.l.b16 %v249
    %v937 = vunpack.c.h.b16 %v249
    %v938 = vunpack.c.l.b16 %v250
    %v939 = vunpack.c.h.b16 %v250
    %v940 = vunpack.c.l.b16 %v251
    %v941 = vunpack.c.h.b16 %v251
    %v942 = vunpack.c.l.b16 %v252
    %v943 = vunpack.c.h.b16 %v252
    %v944 = vunpack.c.l.b16 %v253
    %v945 = vunpack.c.h.b16 %v253
    %v946 = vunpack.c.l.b16 %v254
    %v947 = vunpack.c.h.b16 %v254
    %v948 = vunpack.c.l.b16 %v255
    %v949 = vunpack.c.h.b16 %v255
    %v950 = vunpack.c.l.b16 %v256
    %v951 = vunpack.c.h.b16 %v256
    %v952 = vunpack.c.l.b16 %v257
    %v953 = vunpack.c.h.b16 %v257
    %v954 = vunpack.c.l.b16 %v258
    %v955 = vunpack.c.h.b16 %v258
    %v956 = vunpack.c.l.b16 %v259
    %v957 = vunpack.c.h.b16 %v259
    %v958 = vunpack.c.l.b16 %v260
    %v959 = vunpack.c.h.b16 %v260
    %v960 = vunpack.c.l.b16 %v261
    %v961 = vunpack.c.h.b16 %v261
    %v962 = vunpack.c.l.b16 %v262
    %v963 = vunpack.c.h.b16 %v262
    %v964 = vunpack.c.l.b16 %v263
    %v965 = vunpack.c.h.b16 %v263
    %v966 = vunpack.c.l.b16 %v264
    %v967 = vunpack.c.h.b16 %v264
    %v968 = vunpack.c.l.b16 %v265
    %v969 = vunpack.c.h.b16 %v265
    %v970 = vunpack.c.l.b16 %v266
    %v971 = vunpack.c.h.b16 %v266
    %v972 = vunpack.c.l.b16 %v267
    %v973 = vunpack.c.h.b16 %v267
    %v974 = vunpack.c.l.b16 %v268
    %v975 = vunpack.c.h.b16 %v268
    %v976 = vunpack.c.l.b16 %v269
    %v977 = vunpack.c.h.b16 %v269
    %v978 = vunpack.c.l.b16 %v270
    %v979 = vunpack.c.h.b16 %v270
    %v980 = vunpack.c.l.b16 %v271
    %v981 = vunpack.c.h.b16 %v271
    %v982 = vunpack.c.l.b16 %v272
    %v983 = vunpack.c.h.b16 %v272
    %v984 = vunpack.c.l.b16 %v273
    %v985 = vunpack.c.h.b16 %v273
    %v986 = vunpack.c.l.b16 %v274
    %v987 = vunpack.c.h.b16 %v274
    %v988 = vunpack.c.l.b16 %v275
    %v989 = vunpack.c.h.b16 %v275
    %v990 = vunpack.c.l.b16 %v276
    %v991 = vunpack.c.h.b16 %v276
    %v992 = vunpack.c.l.b16 %v277
    %v993 = vunpack.c.h.b16 %v277
    %v994 = vunpack.c.l.b16 %v278
    %v995 = vunpack.c.h.b16 %v278
    %v996 = vunpack.c.l.b16 %v279
    %v997 = vunpack.c.h.b16 %v279
    %v998 = vunpack.c.l.b16 %v280
    %v999 = vunpack.c.h.b16 %v280
    %v1000 = vunpack.c.l.b16 %v281
    %v1001 = vunpack.c.h.b16 %v281
    %v1002 = vunpack.c.l.b16 %v282
    %v1003 = vunpack.c.h.b16 %v282
    %v1004 = vunpack.c.l.b16 %v283
    %v1005 = vunpack.c.h.b16 %v283
    %v1006 = vunpack.c.l.b16 %v284
    %v1007 = vunpack.c.h.b16 %v284
    %v1008 = vunpack.c.l.b16 %v285
    %v1009 = vunpack.c.h.b16 %v285
    %v1010 = vunpack.c.l.b16 %v286
    %v1011 = vunpack.c.h.b16 %v286
    %v1012 = vunpack.c.l.b16 %v287
    %v1013 = vunpack.c.h.b16 %v287
    %v1014 = vunpack.c.l.b16 %v288
    %v1015 = vunpack.c.h.b16 %v288
    %v1016 = vunpack.c.l.b16 %v289
    %v1017 = vunpack.c.h.b16 %v289
    %v1018 = vunpack.c.l.b16 %v290
    %v1019 = vunpack.c.h.b16 %v290
    %v1020 = vunpack.c.l.b16 %v291
    %v1021 = vunpack.c.h.b16 %v291
    %v1022 = vunpack.c.l.b16 %v292
    %v1023 = vunpack.c.h.b16 %v292
    %v1024 = vunpack.c.l.b16 %v293
    %v1025 = vunpack.c.h.b16 %v293
    %v1026 = vunpack.c.l.b16 %v294
    %v1027 = vunpack.c.h.b16 %v294
    %v1028 = vunpack.c.l.b16 %v295
    %v1029 = vunpack.c.h.b16 %v295
    %v1030 = vunpack.c.l.b16 %v296
    %v1031 = vunpack.c.h.b16 %v296
    %v1032 = vunpack.c.l.b16 %v297
    %v1033 = vunpack.c.h.b16 %v297
    %v1034 = vunpack.c.l.b16 %v298
    %v1035 = vunpack.c.h.b16 %v298
    %v1036 = vunpack.c.l.b16 %v299
    %v1037 = vunpack.c.h.b16 %v299
    %v1038 = vunpack.c.l.b16 %v300
    %v1039 = vunpack.c.h.b16 %v300
    %v1040 = vunpack.c.l.b16 %v301
    %v1041 = vunpack.c.h.b16 %v301
    %v1042 = vunpack.c.l.b16 %v302
    %v1043 = vunpack.c.h.b16 %v302
    %v1044 = vunpack.c.l.b16 %v303
    %v1045 = vunpack.c.h.b16 %v303
    %v1046 = vunpack.c.l.b16 %v304
    %v1047 = vunpack.c.h.b16 %v304
    %v1048 = vunpack.c.l.b16 %v305
    %v1049 = vunpack.c.h.b16 %v305
    %v1050 = vunpack.c.l.b16 %v306
    %v1051 = vunpack.c.h.b16 %v306
    %v1052 = vunpack.c.l.b16 %v307
    %v1053 = vunpack.c.h.b16 %v307
    %v1054 = vunpack.c.l.b16 %v308
    %v1055 = vunpack.c.h.b16 %v308
    %v1056 = vunpack.c.l.b16 %v309
    %v1057 = vunpack.c.h.b16 %v309
    %v1058 = vunpack.c.l.b16 %v310
    %v1059 = vunpack.c.h.b16 %v310
    %v1060 = vunpack.c.l.b16 %v311
    %v1061 = vunpack.c.h.b16 %v311
    %v1062 = vunpack.c.l.b16 %v312
    %v1063 = vunpack.c.h.b16 %v312
    %v1064 = vunpack.c.l.b16 %v313
    %v1065 = vunpack.c.h.b16 %v313
    %v1066 = vunpack.c.l.b16 %v314
    %v1067 = vunpack.c.h.b16 %v314
    %v1068 = vunpack.c.l.b16 %v315
    %v1069 = vunpack.c.h.b16 %v315
    %v1070 = vunpack.c.l.b16 %v316
    %v1071 = vunpack.c.h.b16 %v316
    %v1072 = vunpack.c.l.b16 %v317
    %v1073 = vunpack.c.h.b16 %v317
    %v1074 = vunpack.c.l.b16 %v318
    %v1075 = vunpack.c.h.b16 %v318
    %v1076 = vunpack.c.l.b16 %v319
    %v1077 = vunpack.c.h.b16 %v319
    %v1078 = vunpack.c.l.b16 %v320
    %v1079 = vunpack.c.h.b16 %v320
    %v1080 = vunpack.c.l.b16 %v321
    %v1081 = vunpack.c.h.b16 %v321
    %v1082 = vunpack.c.l.b16 %v322
    %v1083 = vunpack.c.h.b16 %v322
    %v1084 = vunpack.c.l.b16 %v323
    %v1085 = vunpack.c.h.b16 %v323
    %v1086 = vunpack.c.l.b16 %v324
    %v1087 = vunpack.c.h.b16 %v324
    %v1088 = vunpack.c.l.b16 %v325
    %v1089 = vunpack.c.h.b16 %v325
    %v1090 = vunpack.c.l.b16 %v326
    %v1091 = vunpack.c.h.b16 %v326
    %v1092 = vunpack.c.l.b16 %v327
    %v1093 = vunpack.c.h.b16 %v327
    %v1094 = vunpack.c.l.b16 %v328
    %v1095 = vunpack.c.h.b16 %v328
    %v1096 = vunpack.c.l.b16 %v329
    %v1097 = vunpack.c.h.b16 %v329
    %v1098 = vunpack.c.l.b16 %v330
    %v1099 = vunpack.c.h.b16 %v330
    %v1100 = vunpack.c.l.b16 %v331
    %v1101 = vunpack.c.h.b16 %v331
    %v1102 = vunpack.c.l.b16 %v332
    %v1103 = vunpack.c.h.b16 %v332
    %v1104 = vunpack.c.l.b16 %v333
    %v1105 = vunpack.c.h.b16 %v333
    %v1106 = vunpack.c.l.b16 %v334
    %v1107 = vunpack.c.h.b16 %v334
    %v1108 = vunpack.c.l.b16 %v335
    %v1109 = vunpack.c.h.b16 %v335
    %v1110 = vunpack.c.l.b16 %v336
    %v1111 = vunpack.c.h.b16 %v336
    %v1112 = vunpack.c.l.b16 %v337
    %v1113 = vunpack.c.h.b16 %v337
    %v1114 = vunpack.c.l.b16 %v338
    %v1115 = vunpack.c.h.b16 %v338
    %v1116 = vunpack.c.l.b16 %v339
    %v1117 = vunpack.c.h.b16 %v339
    %v1118 = vunpack.c.l.b16 %v340
    %v1119 = vunpack.c.h.b16 %v340
    %v1120 = vunpack.c.l.b16 %v341
    %v1121 = vunpack.c.h.b16 %v341
    %v1122 = vunpack.c.l.b16 %v342
    %v1123 = vunpack.c.h.b16 %v342
    %v1124 = vunpack.c.l.b16 %v343
    %v1125 = vunpack.c.h.b16 %v343
    %v1126 = vunpack.c.l.b16 %v344
    %v1127 = vunpack.c.h.b16 %v344
    %v1128 = vunpack.c.l.b16 %v345
    %v1129 = vunpack.c.h.b16 %v345
    %v1130 = vunpack.c.l.b16 %v346
    %v1131 = vunpack.c.h.b16 %v346
    %v1132 = vunpack.c.l.b16 %v347
    %v1133 = vunpack.c.h.b16 %v347
    %v1134 = vunpack.c.l.b16 %v348
    %v1135 = vunpack.c.h.b16 %v348
    %v1136 = vunpack.c.l.b16 %v349
    %v1137 = vunpack.c.h.b16 %v349
    %v1138 = vpack.c.b16 %v634, %v626
    %v1139 = vpack.c.b16 %v635, %v627
    %v1140 = vpack.c.b16 %v636, %v628
    %v1141 = vpack.c.b16 %v637, %v629
    %v1142 = vpack.c.b16 %v638, %v630
    %v1143 = vpack.c.b16 %v639, %v631
    %v1144 = vpack.c.b16 %v640, %v632
    %v1145 = vpack.c.b16 %v641, %v633
    %v1146 = vpack.c.b16 %v650, %v642
    %v1147 = vpack.c.b16 %v651, %v643
    %v1148 = vpack.c.b16 %v652, %v644
    %v1149 = vpack.c.b16 %v653, %v645
    %v1150 = vpack.c.b16 %v654, %v646
    %v1151 = vpack.c.b16 %v655, %v647
    %v1152 = vpack.c.b16 %v656, %v648
    %v1153 = vpack.c.b16 %v657, %v649
    %v1154 = vpack.c.b16 %v666, %v658
    %v1155 = vpack.c.b16 %v667, %v659
    %v1156 = vpack.c.b16 %v668, %v660
    %v1157 = vpack.c.b16 %v669, %v661
    %v1158 = vpack.c.b16 %v670, %v662
    %v1159 = vpack.c.b16 %v671, %v663
    %v1160 = vpack.c.b16 %v672, %v664
    %v1161 = vpack.c.b16 %v673, %v665
    %v1162 = vpack.c.b16 %v682, %v674
    %v1163 = vpack.c.b16 %v683, %v675
    %v1164 = vpack.c.b16 %v684, %v676
    %v1165 = vpack.c.b16 %v685, %v677
    %v1166 = vpack.c.b16 %v686, %v678
    %v1167 = vpack.c.b16 %v687, %v679
    %v1168 = vpack.c.b16 %v688, %v680
    %v1169 = vpack.c.b16 %v689, %v681
    %v1170 = vpack.c.b16 %v698, %v690
    %v1171 = vpack.c.b16 %v699, %v691
    %v1172 = vpack.c.b16 %v700, %v692
    %v1173 = vpack.c.b16 %v701, %v693
    %v1174 = vpack.c.b16 %v702, %v694
    %v1175 = vpack.c.b16 %v703, %v695
    %v1176 = vpack.c.b16 %v704, %v696
    %v1177 = vpack.c.b16 %v705, %v697
    %v1178 = vpack.c.b16 %v714, %v706
    %v1179 = vpack.c.b16 %v715, %v707
    %v1180 = vpack.c.b16 %v716, %v708
    %v1181 = vpack.c.b16 %v717, %v709
    %v1182 = vpack.c.b16 %v718, %v710
    %v1183 = vpack.c.b16 %v719, %v711
    %v1184 = vpack.c.b16 %v720, %v712
    %v1185 = vpack.c.b16 %v721, %v713
    %v1186 = vpack.c.b16 %v730, %v722
    %v1187 = vpack.c.b16 %v731, %v723
    %v1188 = vpack.c.b16 %v732, %v724
    %v1189 = vpack.c.b16 %v733, %v725
    %v1190 = vpack.c.b16 %v734, %v726
    %v1191 = vpack.c.b16 %v735, %v727
    %v1192 = vpack.c.b16 %v736, %v728
    %v1193 = vpack.c.b16 %v737, %v729
    %v1194 = vpack.c.b16 %v746, %v738
    %v1195 = vpack.c.b16 %v747, %v739
    %v1196 = vpack.c.b16 %v748, %v740
    %v1197 = vpack.c.b16 %v749, %v741
    %v1198 = vpack.c.b16 %v750, %v742
    %v1199 = vpack.c.b16 %v751, %v743
    %v1200 = vpack.c.b16 %v752, %v744
    %v1201 = vpack.c.b16 %v753, %v745
    %v1202 = vpack.c.b16 %v762, %v754
    %v1203 = vpack.c.b16 %v763, %v755
    %v1204 = vpack.c.b16 %v764, %v756
    %v1205 = vpack.c.b16 %v765, %v757
    %v1206 = vpack.c.b16 %v766, %v758
    %v1207 = vpack.c.b16 %v767, %v759
    %v1208 = vpack.c.b16 %v768, %v760
    %v1209 = vpack.c.b16 %v769, %v761
    %v1210 = vpack.c.b16 %v778, %v770
    %v1211 = vpack.c.b16 %v779, %v771
    %v1212 = vpack.c.b16 %v780, %v772
    %v1213 = vpack.c.b16 %v781, %v773
    %v1214 = vpack.c.b16 %v782, %v774
    %v1215 = vpack.c.b16 %v783, %v775
    %v1216 = vpack.c.b16 %v784, %v776
    %v1217 = vpack.c.b16 %v785, %v777
    %v1218 = vpack.c.b16 %v794, %v786
    %v1219 = vpack.c.b16 %v795, %v787
    %v1220 = vpack.c.b16 %v796, %v788
    %v1221 = vpack.c.b16 %v797, %v789
    %v1222 = vpack.c.b16 %v798, %v790
    %v1223 = vpack.c.b16 %v799, %v791
    %v1224 = vpack.c.b16 %v800, %v792
    %v1225 = vpack.c.b16 %v801, %v793
    %v1226 = vpack.c.b16 %v810, %v802
    %v1227 = vpack.c.b16 %v811, %v803
    %v1228 = vpack.c.b16 %v812, %v804
    %v1229 = vpack.c.b16 %v813, %v805
    %v1230 = vpack.c.b16 %v814, %v806
    %v1231 = vpack.c.b16 %v815, %v807
    %v1232 = vpack.c.b16 %v816, %v808
    %v1233 = vpack.c.b16 %v817, %v809
    %v1234 = vpack.c.b16 %v826, %v818
    %v1235 = vpack.c.b16 %v827, %v819
    %v1236 = vpack.c.b16 %v828, %v820
    %v1237 = vpack.c.b16 %v829, %v821
    %v1238 = vpack.c.b16 %v830, %v822
    %v1239 = vpack.c.b16 %v831, %v823
    %v1240 = vpack.c.b16 %v832, %v824
    %v1241 = vpack.c.b16 %v833, %v825
    %v1242 = vpack.c.b16 %v842, %v834
    %v1243 = vpack.c.b16 %v843, %v835
    %v1244 = vpack.c.b16 %v844, %v836
    %v1245 = vpack.c.b16 %v845, %v837
    %v1246 = vpack.c.b16 %v846, %v838
    %v1247 = vpack.c.b16 %v847, %v839
    %v1248 = vpack.c.b16 %v848, %v840
    %v1249 = vpack.c.b16 %v849, %v841
    %v1250 = vpack.c.b16 %v858, %v850
    %v1251 = vpack.c.b16 %v859, %v851
    %v1252 = vpack.c.b16 %v860, %v852
    %v1253 = vpack.c.b16 %v861, %v853
    %v1254 = vpack.c.b16 %v862, %v854
    %v1255 = vpack.c.b16 %v863, %v855
    %v1256 = vpack.c.b16 %v864, %v856
    %v1257 = vpack.c.b16 %v865, %v857
    %v1258 = vpack.c.b16 %v874, %v866
    %v1259 = vpack.c.b16 %v875, %v867
    %v1260 = vpack.c.b16 %v876, %v868
    %v1261 = vpack.c.b16 %v877, %v869
    %v1262 = vpack.c.b16 %v878, %v870
    %v1263 = vpack.c.b16 %v879, %v871
    %v1264 = vpack.c.b16 %v880, %v872
    %v1265 = vpack.c.b16 %v881, %v873
    %v1266 = vpack.c.b16 %v890, %v882
    %v1267 = vpack.c.b16 %v891, %v883
    %v1268 = vpack.c.b16 %v892, %v884
    %v1269 = vpack.c.b16 %v893, %v885
    %v1270 = vpack.c.b16 %v894, %v886
    %v1271 = vpack.c.b16 %v895, %v887
    %v1272 = vpack.c.b16 %v896, %v888
    %v1273 = vpack.c.b16 %v897, %v889
    %v1274 = vpack.c.b16 %v906, %v898
    %v1275 = vpack.c.b16 %v907, %v899
    %v1276 = vpack.c.b16 %v908, %v900
    %v1277 = vpack.c.b16 %v909, %v901
    %v1278 = vpack.c.b16 %v910, %v902
    %v1279 = vpack.c.b16 %v911, %v903
    %v1280 = vpack.c.b16 %v912, %v904
    %v1281 = vpack.c.b16 %v913, %v905
    %v1282 = vpack.c.b16 %v922, %v914
    %v1283 = vpack.c.b16 %v923, %v915
    %v1284 = vpack.c.b16 %v924, %v916
    %v1285 = vpack.c.b16 %v925, %v917
    %v1286 = vpack.c.b16 %v926, %v918
    %v1287 = vpack.c.b16 %v927, %v919
    %v1288 = vpack.c.b16 %v928, %v920
    %v1289 = vpack.c.b16 %v929, %v921
    %v1290 = vpack.c.b16 %v938, %v930
    %v1291 = vpack.c.b16 %v939, %v931
    %v1292 = vpack.c.b16 %v940, %v932
    %v1293 = vpack.c.b16 %v941, %v933
    %v1294 = vpack.c.b16 %v942, %v934
    %v1295 = vpack.c.b16 %v943, %v935
    %v1296 = vpack.c.b16 %v944, %v936
    %v1297 = vpack.c.b16 %v945, %v937
    %v1298 = vpack.c.b16 %v954, %v946
    %v1299 = vpack.c.b16 %v955, %v947
    %v1300 = vpack.c.b16 %v956, %v948
    %v1301 = vpack.c.b16 %v957, %v949
    %v1302 = vpack.c.b16 %v958, %v950
    %v1303 = vpack.c.b16 %v959, %v951
    %v1304 = vpack.c.b16 %v960, %v952
    %v1305 = vpack.c.b16 %v961, %v953
    %v1306 = vpack.c.b16 %v970, %v962
    %v1307 = vpack.c.b16 %v971, %v963
    %v1308 = vpack.c.b16 %v972, %v964
    %v1309 = vpack.c.b16 %v973, %v965
    %v1310 = vpack.c.b16 %v974, %v966
    %v1311 = vpack.c.b16 %v975, %v967
    %v1312 = vpack.c.b16 %v976, %v968
    %v1313 = vpack.c.b16 %v977, %v969
    %v1314 = vpack.c.b16 %v986, %v978
    %v1315 = vpack.c.b16 %v987, %v979
    %v1316 = vpack.c.b16 %v988, %v980
    %v1317 = vpack.c.b16 %v989, %v981
    %v1318 = vpack.c.b16 %v990, %v982
    %v1319 = vpack.c.b16 %v991, %v983
    %v1320 = vpack.c.b16 %v992, %v984
    %v1321 = vpack.c.b16 %v993, %v985
    %v1322 = vpack.c.b16 %v1002, %v994
    %v1323 = vpack.c.b16 %v1003, %v995
    %v1324 = vpack.c.b16 %v1004, %v996
    %v1325 = vpack.c.b16 %v1005, %v997
    %v1326 = vpack.c.b16 %v1006, %v998
    %v1327 = vpack.c.b16 %v1007, %v999
    %v1328 = vpack.c.b16 %v1008, %v1000
    %v1329 = vpack.c.b16 %v1009, %v1001
    %v1330 = vpack.c.b16 %v1018, %v1010
    %v1331 = vpack.c.b16 %v1019, %v1011
    %v1332 = vpack.c.b16 %v1020, %v1012
    %v1333 = vpack.c.b16 %v1021, %v1013
    %v1334 = vpack.c.b16 %v1022, %v1014
    %v1335 = vpack.c.b16 %v1023, %v1015
    %v1336 = vpack.c.b16 %v1024, %v1016
    %v1337 = vpack.c.b16 %v1025, %v1017
    %v1338 = vpack.c.b16 %v1034, %v1026
    %v1339 = vpack.c.b16 %v1035, %v1027
    %v1340 = vpack.c.b16 %v1036, %v1028
    %v1341 = vpack.c.b16 %v1037, %v1029
    %v1342 = vpack.c.b16 %v1038, %v1030
    %v1343 = vpack.c.b16 %v1039, %v1031
    %v1344 = vpack.c.b16 %v1040, %v1032
    %v1345 = vpack.c.b16 %v1041, %v1033
    %v1346 = vpack.c.b16 %v1050, %v1042
    %v1347 = vpack.c.b16 %v1051, %v1043
    %v1348 = vpack.c.b16 %v1052, %v1044
    %v1349 = vpack.c.b16 %v1053, %v1045
    %v1350 = vpack.c.b16 %v1054, %v1046
    %v1351 = vpack.c.b16 %v1055, %v1047
    %v1352 = vpack.c.b16 %v1056, %v1048
    %v1353 = vpack.c.b16 %v1057, %v1049
    %v1354 = vpack.c.b16 %v1066, %v1058
    %v1355 = vpack.c.b16 %v1067, %v1059
    %v1356 = vpack.c.b16 %v1068, %v1060
    %v1357 = vpack.c.b16 %v1069, %v1061
    %v1358 = vpack.c.b16 %v1070, %v1062
    %v1359 = vpack.c.b16 %v1071, %v1063
    %v1360 = vpack.c.b16 %v1072, %v1064
    %v1361 = vpack.c.b16 %v1073, %v1065
    %v1362 = vpack.c.b16 %v1082, %v1074
    %v1363 = vpack.c.b16 %v1083, %v1075
    %v1364 = vpack.c.b16 %v1084, %v1076
    %v1365 = vpack.c.b16 %v1085, %v1077
    %v1366 = vpack.c.b16 %v1086, %v1078
    %v1367 = vpack.c.b16 %v1087, %v1079
    %v1368 = vpack.c.b16 %v1088, %v1080
    %v1369 = vpack.c.b16 %v1089, %v1081
    %v1370 = vpack.c.b16 %v1098, %v1090
    %v1371 = vpack.c.b16 %v1099, %v1091
    %v1372 = vpack.c.b16 %v1100, %v1092
    %v1373 = vpack.c.b16 %v1101, %v1093
    %v1374 = vpack.c.b16 %v1102, %v1094
    %v1375 = vpack.c.b16 %v1103, %v1095
    %v1376 = vpack.c.b16 %v1104, %v1096
    %v1377 = vpack.c.b16 %v1105, %v1097
    %v1378 = vpack.c.b16 %v1114, %v1106
    %v1379 = vpack.c.b16 %v1115, %v1107
    %v1380 = vpack.c.b16 %v1116, %v1108
    %v1381 = vpack.c.b16 %v1117, %v1109
    %v1382 = vpack.c.b16 %v1118, %v1110
    %v1383 = vpack.c.b16 %v1119, %v1111
    %v1384 = vpack.c.b16 %v1120, %v1112
    %v1385 = vpack.c.b16 %v1121, %v1113
    %v1386 = vpack.c.b16 %v1130, %v1122
    %v1387 = vpack.c.b16 %v1131, %v1123
    %v1388 = vpack.c.b16 %v1132, %v1124
    %v1389 = vpack.c.b16 %v1133, %v1125
    %v1390 = vpack.c.b16 %v1134, %v1126
    %v1391 = vpack.c.b16 %v1135, %v1127
    %v1392 = vpack.c.b16 %v1136, %v1128
    %v1393 = vpack.c.b16 %v1137, %v1129
    %1650 = vmatprep.subr.bf16.mxu0 %v1195
    %1651 = vmatpush1.bf16.msra.mxu0 %v1194
    %1652 = vmatprep.subr.bf16.mxu0 %v1187
    %1653 = vmatpush1.bf16.msra.mxu0 %v1186
    %1654 = vmatprep.subr.bf16.mxu0 %v1179
    %1655 = vmatpush1.bf16.msra.mxu0 %v1178
    %1656 = vmatprep.subr.bf16.mxu0 %v1171
    %1657 = vmatpush1.bf16.msra.mxu0 %v1170
    %1658 = vmatprep.subr.bf16.mxu0 %v1163
    %1659 = vmatpush1.bf16.msra.mxu0 %v1162
    %1660 = vmatprep.subr.bf16.mxu0 %v1155
    %1661 = vmatpush1.bf16.msra.mxu0 %v1154
    %1662 = vmatprep.subr.bf16.mxu0 %v1147
    %1663 = vmatpush1.bf16.msra.mxu0 %v1146
    %1664 = vmatprep.subr.bf16.mxu0 %v1139
    %1665 = vmatpush1.bf16.msra.mxu0 %v1138
    %1666 = vmatprep.subr.bf16.mxu0 %v1259
    %1667 = vmatpush2.bf16.msra.mxu0 %v1258
    %1668 = vmatprep.subr.bf16.mxu0 %v1251
    %1669 = vmatpush2.bf16.msra.mxu0 %v1250
    %1670 = vmatprep.subr.bf16.mxu0 %v1243
    %1671 = vmatpush2.bf16.msra.mxu0 %v1242
    %1672 = vmatprep.subr.bf16.mxu0 %v1235
    %1673 = vmatpush2.bf16.msra.mxu0 %v1234
    %1674 = vmatprep.subr.bf16.mxu0 %v1227
    %1675 = vmatpush2.bf16.msra.mxu0 %v1226
    %1676 = vmatprep.subr.bf16.mxu0 %v1219
    %1677 = vmatpush2.bf16.msra.mxu0 %v1218
    %1678 = vmatprep.subr.bf16.mxu0 %v1211
    %1679 = vmatpush2.bf16.msra.mxu0 %v1210
    %1680 = vmatprep.subr.bf16.mxu0 %v1203
    %1681 = vmatpush2.bf16.msra.mxu0 %v1202
    %1682 = vmatprep.mubr.bf16.mxu0 %v363
    %1683 = vmatmul.mubr.bf16.gmra.mxu0 %v362
    %v1684 = vpop.f32.mrf.mxu0
    %v1685 = vadd.f32 0.0, %v1684
    %v1686 = vpop.f32.mrf.mxu0
    %v1687 = vadd.f32 0.0, %v1686
    %v1688 = vpop.f32.mrf.mxu0
    %v1689 = vadd.f32 0.0, %v1688
    %v1690 = vpop.f32.mrf.mxu0
    %v1691 = vadd.f32 0.0, %v1690
    %1692 = vdwg.mxu0
    %1693 = vmatprep.subr.bf16.mxu0 %v1323
    %1694 = vmatpush1.bf16.msra.mxu0 %v1322
    %1695 = vmatprep.subr.bf16.mxu0 %v1315
    %1696 = vmatpush1.bf16.msra.mxu0 %v1314
    %1697 = vmatprep.subr.bf16.mxu0 %v1307
    %1698 = vmatpush1.bf16.msra.mxu0 %v1306
    %1699 = vmatprep.subr.bf16.mxu0 %v1299
    %1700 = vmatpush1.bf16.msra.mxu0 %v1298
    %1701 = vmatprep.subr.bf16.mxu0 %v1291
    %1702 = vmatpush1.bf16.msra.mxu0 %v1290
    %1703 = vmatprep.subr.bf16.mxu0 %v1283
    %1704 = vmatpush1.bf16.msra.mxu0 %v1282
    %1705 = vmatprep.subr.bf16.mxu0 %v1275
    %1706 = vmatpush1.bf16.msra.mxu0 %v1274
    %1707 = vmatprep.subr.bf16.mxu0 %v1267
    %1708 = vmatpush1.bf16.msra.mxu0 %v1266
    %1709 = vmatprep.subr.bf16.mxu0 %v1387
    %1710 = vmatpush2.bf16.msra.mxu0 %v1386
    %1711 = vmatprep.subr.bf16.mxu0 %v1379
    %1712 = vmatpush2.bf16.msra.mxu0 %v1378
    %1713 = vmatprep.subr.bf16.mxu0 %v1371
    %1714 = vmatpush2.bf16.msra.mxu0 %v1370
    %1715 = vmatprep.subr.bf16.mxu0 %v1363
    %1716 = vmatpush2.bf16.msra.mxu0 %v1362
    %1717 = vmatprep.subr.bf16.mxu0 %v1355
    %1718 = vmatpush2.bf16.msra.mxu0 %v1354
    %1719 = vmatprep.subr.bf16.mxu0 %v1347
    %1720 = vmatpush2.bf16.msra.mxu0 %v1346
    %1721 = vmatprep.subr.bf16.mxu0 %v1339
    %1722 = vmatpush2.bf16.msra.mxu0 %v1338
    %1723 = vmatprep.subr.bf16.mxu0 %v1331
    %1724 = vmatpush2.bf16.msra.mxu0 %v1330
    %1725 = vmatprep.mubr.bf16.mxu0 %v365
    %1726 = vmatmul.mubr.bf16.gmra.mxu0 %v364
    %v1727 = vpop.f32.mrf.mxu0
    %v1728 = vadd.f32 %v1685, %v1727
    %v1729 = vpop.f32.mrf.mxu0
    %v1730 = vadd.f32 %v1687, %v1729
    %v1731 = vpop.f32.mrf.mxu0
    %v1732 = vadd.f32 %v1689, %v1731
    %v1733 = vpop.f32.mrf.mxu0
    %v1734 = vadd.f32 %v1691, %v1733
    %1735 = vdwg.mxu0
    %1736 = vmatprep.subr.bf16.mxu0 %v1197
    %1737 = vmatpush1.bf16.msra.mxu0 %v1196
    %1738 = vmatprep.subr.bf16.mxu0 %v1189
    %1739 = vmatpush1.bf16.msra.mxu0 %v1188
    %1740 = vmatprep.subr.bf16.mxu0 %v1181
    %1741 = vmatpush1.bf16.msra.mxu0 %v1180
    %1742 = vmatprep.subr.bf16.mxu0 %v1173
    %1743 = vmatpush1.bf16.msra.mxu0 %v1172
    %1744 = vmatprep.subr.bf16.mxu0 %v1165
    %1745 = vmatpush1.bf16.msra.mxu0 %v1164
    %1746 = vmatprep.subr.bf16.mxu0 %v1157
    %1747 = vmatpush1.bf16.msra.mxu0 %v1156
    %1748 = vmatprep.subr.bf16.mxu0 %v1149
    %1749 = vmatpush1.bf16.msra.mxu0 %v1148
    %1750 = vmatprep.subr.bf16.mxu0 %v1141
    %1751 = vmatpush1.bf16.msra.mxu0 %v1140
    %1752 = vmatprep.subr.bf16.mxu0 %v1261
    %1753 = vmatpush2.bf16.msra.mxu0 %v1260
    %1754 = vmatprep.subr.bf16.mxu0 %v1253
    %1755 = vmatpush2.bf16.msra.mxu0 %v1252
    %1756 = vmatprep.subr.bf16.mxu0 %v1245
    %1757 = vmatpush2.bf16.msra.mxu0 %v1244
    %1758 = vmatprep.subr.bf16.mxu0 %v1237
    %1759 = vmatpush2.bf16.msra.mxu0 %v1236
    %1760 = vmatprep.subr.bf16.mxu0 %v1229
    %1761 = vmatpush2.bf16.msra.mxu0 %v1228
    %1762 = vmatprep.subr.bf16.mxu0 %v1221
    %1763 = vmatpush2.bf16.msra.mxu0 %v1220
    %1764 = vmatprep.subr.bf16.mxu0 %v1213
    %1765 = vmatpush2.bf16.msra.mxu0 %v1212
    %1766 = vmatprep.subr.bf16.mxu0 %v1205
    %1767 = vmatpush2.bf16.msra.mxu0 %v1204
    %1768 = vmatprep.mubr.bf16.mxu0 %v363
    %1769 = vmatmul.mubr.bf16.gmra.mxu0 %v362
    %v1770 = vpop.f32.mrf.mxu0
    %v1771 = vadd.f32 0.0, %v1770
    %v1772 = vpop.f32.mrf.mxu0
    %v1773 = vadd.f32 0.0, %v1772
    %v1774 = vpop.f32.mrf.mxu0
    %v1775 = vadd.f32 0.0, %v1774
    %v1776 = vpop.f32.mrf.mxu0
    %v1777 = vadd.f32 0.0, %v1776
    %1778 = vdwg.mxu0
    %1779 = vmatprep.subr.bf16.mxu0 %v1325
    %1780 = vmatpush1.bf16.msra.mxu0 %v1324
    %1781 = vmatprep.subr.bf16.mxu0 %v1317
    %1782 = vmatpush1.bf16.msra.mxu0 %v1316
    %1783 = vmatprep.subr.bf16.mxu0 %v1309
    %1784 = vmatpush1.bf16.msra.mxu0 %v1308
    %1785 = vmatprep.subr.bf16.mxu0 %v1301
    %1786 = vmatpush1.bf16.msra.mxu0 %v1300
    %1787 = vmatprep.subr.bf16.mxu0 %v1293
    %1788 = vmatpush1.bf16.msra.mxu0 %v1292
    %1789 = vmatprep.subr.bf16.mxu0 %v1285
    %1790 = vmatpush1.bf16.msra.mxu0 %v1284
    %1791 = vmatprep.subr.bf16.mxu0 %v1277
    %1792 = vmatpush1.bf16.msra.mxu0 %v1276
    %1793 = vmatprep.subr.bf16.mxu0 %v1269
    %1794 = vmatpush1.bf16.msra.mxu0 %v1268
    %1795 = vmatprep.subr.bf16.mxu0 %v1389
    %1796 = vmatpush2.bf16.msra.mxu0 %v1388
    %1797 = vmatprep.subr.bf16.mxu0 %v1381
    %1798 = vmatpush2.bf16.msra.mxu0 %v1380
    %1799 = vmatprep.subr.bf16.mxu0 %v1373
    %1800 = vmatpush2.bf16.msra.mxu0 %v1372
    %1801 = vmatprep.subr.bf16.mxu0 %v1365
    %1802 = vmatpush2.bf16.msra.mxu0 %v1364
    %1803 = vmatprep.subr.bf16.mxu0 %v1357
    %1804 = vmatpush2.bf16.msra.mxu0 %v1356
    %1805 = vmatprep.subr.bf16.mxu0 %v1349
    %1806 = vmatpush2.bf16.msra.mxu0 %v1348
    %1807 = vmatprep.subr.bf16.mxu0 %v1341
    %1808 = vmatpush2.bf16.msra.mxu0 %v1340
    %1809 = vmatprep.subr.bf16.mxu0 %v1333
    %1810 = vmatpush2.bf16.msra.mxu0 %v1332
    %1811 = vmatprep.mubr.bf16.mxu0 %v365
    %1812 = vmatmul.mubr.bf16.gmra.mxu0 %v364
    %v1813 = vpop.f32.mrf.mxu0
    %v1814 = vadd.f32 %v1771, %v1813
    %v1815 = vpop.f32.mrf.mxu0
    %v1816 = vadd.f32 %v1773, %v1815
    %v1817 = vpop.f32.mrf.mxu0
    %v1818 = vadd.f32 %v1775, %v1817
    %v1819 = vpop.f32.mrf.mxu0
    %v1820 = vadd.f32 %v1777, %v1819
    %1821 = vdwg.mxu0
    %1822 = vmatprep.subr.bf16.mxu0 %v1199
    %1823 = vmatpush1.bf16.msra.mxu0 %v1198
    %1824 = vmatprep.subr.bf16.mxu0 %v1191
    %1825 = vmatpush1.bf16.msra.mxu0 %v1190
    %1826 = vmatprep.subr.bf16.mxu0 %v1183
    %1827 = vmatpush1.bf16.msra.mxu0 %v1182
    %1828 = vmatprep.subr.bf16.mxu0 %v1175
    %1829 = vmatpush1.bf16.msra.mxu0 %v1174
    %1830 = vmatprep.subr.bf16.mxu0 %v1167
    %1831 = vmatpush1.bf16.msra.mxu0 %v1166
    %1832 = vmatprep.subr.bf16.mxu0 %v1159
    %1833 = vmatpush1.bf16.msra.mxu0 %v1158
    %1834 = vmatprep.subr.bf16.mxu0 %v1151
    %1835 = vmatpush1.bf16.msra.mxu0 %v1150
    %1836 = vmatprep.subr.bf16.mxu0 %v1143
    %1837 = vmatpush1.bf16.msra.mxu0 %v1142
    %1838 = vmatprep.subr.bf16.mxu0 %v1263
    %1839 = vmatpush2.bf16.msra.mxu0 %v1262
    %1840 = vmatprep.subr.bf16.mxu0 %v1255
    %1841 = vmatpush2.bf16.msra.mxu0 %v1254
    %1842 = vmatprep.subr.bf16.mxu0 %v1247
    %1843 = vmatpush2.bf16.msra.mxu0 %v1246
    %1844 = vmatprep.subr.bf16.mxu0 %v1239
    %1845 = vmatpush2.bf16.msra.mxu0 %v1238
    %1846 = vmatprep.subr.bf16.mxu0 %v1231
    %1847 = vmatpush2.bf16.msra.mxu0 %v1230
    %1848 = vmatprep.subr.bf16.mxu0 %v1223
    %1849 = vmatpush2.bf16.msra.mxu0 %v1222
    %1850 = vmatprep.subr.bf16.mxu0 %v1215
    %1851 = vmatpush2.bf16.msra.mxu0 %v1214
    %1852 = vmatprep.subr.bf16.mxu0 %v1207
    %1853 = vmatpush2.bf16.msra.mxu0 %v1206
    %1854 = vmatprep.mubr.bf16.mxu0 %v363
    %1855 = vmatmul.mubr.bf16.gmra.mxu0 %v362
    %v1856 = vpop.f32.mrf.mxu0
    %v1857 = vadd.f32 0.0, %v1856
    %v1858 = vpop.f32.mrf.mxu0
    %v1859 = vadd.f32 0.0, %v1858
    %v1860 = vpop.f32.mrf.mxu0
    %v1861 = vadd.f32 0.0, %v1860
    %v1862 = vpop.f32.mrf.mxu0
    %v1863 = vadd.f32 0.0, %v1862
    %1864 = vdwg.mxu0
    %1865 = vmatprep.subr.bf16.mxu0 %v1327
    %1866 = vmatpush1.bf16.msra.mxu0 %v1326
    %1867 = vmatprep.subr.bf16.mxu0 %v1319
    %1868 = vmatpush1.bf16.msra.mxu0 %v1318
    %1869 = vmatprep.subr.bf16.mxu0 %v1311
    %1870 = vmatpush1.bf16.msra.mxu0 %v1310
    %1871 = vmatprep.subr.bf16.mxu0 %v1303
    %1872 = vmatpush1.bf16.msra.mxu0 %v1302
    %1873 = vmatprep.subr.bf16.mxu0 %v1295
    %1874 = vmatpush1.bf16.msra.mxu0 %v1294
    %1875 = vmatprep.subr.bf16.mxu0 %v1287
    %1876 = vmatpush1.bf16.msra.mxu0 %v1286
    %1877 = vmatprep.subr.bf16.mxu0 %v1279
    %1878 = vmatpush1.bf16.msra.mxu0 %v1278
    %1879 = vmatprep.subr.bf16.mxu0 %v1271
    %1880 = vmatpush1.bf16.msra.mxu0 %v1270
    %1881 = vmatprep.subr.bf16.mxu0 %v1391
    %1882 = vmatpush2.bf16.msra.mxu0 %v1390
    %1883 = vmatprep.subr.bf16.mxu0 %v1383
    %1884 = vmatpush2.bf16.msra.mxu0 %v1382
    %1885 = vmatprep.subr.bf16.mxu0 %v1375
    %1886 = vmatpush2.bf16.msra.mxu0 %v1374
    %1887 = vmatprep.subr.bf16.mxu0 %v1367
    %1888 = vmatpush2.bf16.msra.mxu0 %v1366
    %1889 = vmatprep.subr.bf16.mxu0 %v1359
    %1890 = vmatpush2.bf16.msra.mxu0 %v1358
    %1891 = vmatprep.subr.bf16.mxu0 %v1351
    %1892 = vmatpush2.bf16.msra.mxu0 %v1350
    %1893 = vmatprep.subr.bf16.mxu0 %v1343
    %1894 = vmatpush2.bf16.msra.mxu0 %v1342
    %1895 = vmatprep.subr.bf16.mxu0 %v1335
    %1896 = vmatpush2.bf16.msra.mxu0 %v1334
    %1897 = vmatprep.mubr.bf16.mxu0 %v365
    %1898 = vmatmul.mubr.bf16.gmra.mxu0 %v364
    %v1899 = vpop.f32.mrf.mxu0
    %v1900 = vadd.f32 %v1857, %v1899
    %v1901 = vpop.f32.mrf.mxu0
    %v1902 = vadd.f32 %v1859, %v1901
    %v1903 = vpop.f32.mrf.mxu0
    %v1904 = vadd.f32 %v1861, %v1903
    %v1905 = vpop.f32.mrf.mxu0
    %v1906 = vadd.f32 %v1863, %v1905
    %1907 = vdwg.mxu0
    %1908 = vmatprep.subr.bf16.mxu0 %v1201
    %1909 = vmatpush1.bf16.msra.mxu0 %v1200
    %1910 = vmatprep.subr.bf16.mxu0 %v1193
    %1911 = vmatpush1.bf16.msra.mxu0 %v1192
    %1912 = vmatprep.subr.bf16.mxu0 %v1185
    %1913 = vmatpush1.bf16.msra.mxu0 %v1184
    %1914 = vmatprep.subr.bf16.mxu0 %v1177
    %1915 = vmatpush1.bf16.msra.mxu0 %v1176
    %1916 = vmatprep.subr.bf16.mxu0 %v1169
    %1917 = vmatpush1.bf16.msra.mxu0 %v1168
    %1918 = vmatprep.subr.bf16.mxu0 %v1161
    %1919 = vmatpush1.bf16.msra.mxu0 %v1160
    %1920 = vmatprep.subr.bf16.mxu0 %v1153
    %1921 = vmatpush1.bf16.msra.mxu0 %v1152
    %1922 = vmatprep.subr.bf16.mxu0 %v1145
    %1923 = vmatpush1.bf16.msra.mxu0 %v1144
    %1924 = vmatprep.subr.bf16.mxu0 %v1265
    %1925 = vmatpush2.bf16.msra.mxu0 %v1264
    %1926 = vmatprep.subr.bf16.mxu0 %v1257
    %1927 = vmatpush2.bf16.msra.mxu0 %v1256
    %1928 = vmatprep.subr.bf16.mxu0 %v1249
    %1929 = vmatpush2.bf16.msra.mxu0 %v1248
    %1930 = vmatprep.subr.bf16.mxu0 %v1241
    %1931 = vmatpush2.bf16.msra.mxu0 %v1240
    %1932 = vmatprep.subr.bf16.mxu0 %v1233
    %1933 = vmatpush2.bf16.msra.mxu0 %v1232
    %1934 = vmatprep.subr.bf16.mxu0 %v1225
    %1935 = vmatpush2.bf16.msra.mxu0 %v1224
    %1936 = vmatprep.subr.bf16.mxu0 %v1217
    %1937 = vmatpush2.bf16.msra.mxu0 %v1216
    %1938 = vmatprep.subr.bf16.mxu0 %v1209
    %1939 = vmatpush2.bf16.msra.mxu0 %v1208
    %1940 = vmatprep.mubr.bf16.mxu0 %v363
    %1941 = vmatmul.mubr.bf16.gmra.mxu0 %v362
    %v1942 = vpop.f32.mrf.mxu0
    %v1943 = vadd.f32 0.0, %v1942
    %v1944 = vpop.f32.mrf.mxu0
    %v1945 = vadd.f32 0.0, %v1944
    %v1946 = vpop.f32.mrf.mxu0
    %v1947 = vadd.f32 0.0, %v1946
    %v1948 = vpop.f32.mrf.mxu0
    %v1949 = vadd.f32 0.0, %v1948
    %1950 = vdwg.mxu0
    %1951 = vmatprep.subr.bf16.mxu0 %v1329
    %1952 = vmatpush1.bf16.msra.mxu0 %v1328
    %1953 = vmatprep.subr.bf16.mxu0 %v1321
    %1954 = vmatpush1.bf16.msra.mxu0 %v1320
    %1955 = vmatprep.subr.bf16.mxu0 %v1313
    %1956 = vmatpush1.bf16.msra.mxu0 %v1312
    %1957 = vmatprep.subr.bf16.mxu0 %v1305
    %1958 = vmatpush1.bf16.msra.mxu0 %v1304
    %1959 = vmatprep.subr.bf16.mxu0 %v1297
    %1960 = vmatpush1.bf16.msra.mxu0 %v1296
    %1961 = vmatprep.subr.bf16.mxu0 %v1289
    %1962 = vmatpush1.bf16.msra.mxu0 %v1288
    %1963 = vmatprep.subr.bf16.mxu0 %v1281
    %1964 = vmatpush1.bf16.msra.mxu0 %v1280
    %1965 = vmatprep.subr.bf16.mxu0 %v1273
    %1966 = vmatpush1.bf16.msra.mxu0 %v1272
    %1967 = vmatprep.subr.bf16.mxu0 %v1393
    %1968 = vmatpush2.bf16.msra.mxu0 %v1392
    %1969 = vmatprep.subr.bf16.mxu0 %v1385
    %1970 = vmatpush2.bf16.msra.mxu0 %v1384
    %1971 = vmatprep.subr.bf16.mxu0 %v1377
    %1972 = vmatpush2.bf16.msra.mxu0 %v1376
    %1973 = vmatprep.subr.bf16.mxu0 %v1369
    %1974 = vmatpush2.bf16.msra.mxu0 %v1368
    %1975 = vmatprep.subr.bf16.mxu0 %v1361
    %1976 = vmatpush2.bf16.msra.mxu0 %v1360
    %1977 = vmatprep.subr.bf16.mxu0 %v1353
    %1978 = vmatpush2.bf16.msra.mxu0 %v1352
    %1979 = vmatprep.subr.bf16.mxu0 %v1345
    %1980 = vmatpush2.bf16.msra.mxu0 %v1344
    %1981 = vmatprep.subr.bf16.mxu0 %v1337
    %1982 = vmatpush2.bf16.msra.mxu0 %v1336
    %1983 = vmatprep.mubr.bf16.mxu0 %v365
    %1984 = vmatmul.mubr.bf16.gmra.mxu0 %v364
    %v1985 = vpop.f32.mrf.mxu0
    %v1986 = vadd.f32 %v1943, %v1985
    %v1987 = vpop.f32.mrf.mxu0
    %v1988 = vadd.f32 %v1945, %v1987
    %v1989 = vpop.f32.mrf.mxu0
    %v1990 = vadd.f32 %v1947, %v1989
    %v1991 = vpop.f32.mrf.mxu0
    %v1992 = vadd.f32 %v1949, %v1991
    %1993 = vdwg.mxu0
    %v1994 = vadd.f32 %v74, %v1728
    %v1995 = vadd.f32 %v75, %v1730
    %v1996 = vadd.f32 %v76, %v1814
    %v1997 = vadd.f32 %v77, %v1816
    %v1998 = vadd.f32 %v78, %v1900
    %v1999 = vadd.f32 %v79, %v1902
    %v2000 = vadd.f32 %v80, %v1986
    %v2001 = vadd.f32 %v81, %v1988
    %v2002 = vadd.f32 %v82, %v1732
    %v2003 = vadd.f32 %v83, %v1734
    %v2004 = vadd.f32 %v84, %v1818
    %v2005 = vadd.f32 %v85, %v1820
    %v2006 = vadd.f32 %v86, %v1904
    %v2007 = vadd.f32 %v87, %v1906
    %v2008 = vadd.f32 %v88, %v1990
    %v2009 = vadd.f32 %v89, %v1992
    %2010 = vst [vmem:[#allocation2] sm:$0xff] %v1994
    %2011 = vst [vmem:[#allocation2 + $0x8] sm:$0xff] %v1995
    %2012 = vst [vmem:[#allocation2 + $0x10] sm:$0xff] %v1996
    %2013 = vst [vmem:[#allocation2 + $0x18] sm:$0xff] %v1997
    %2014 = vst [vmem:[#allocation2 + $0x20] sm:$0xff] %v1998
    %2015 = vst [vmem:[#allocation2 + $0x28] sm:$0xff] %v1999
    %2016 = vst [vmem:[#allocation2 + $0x30] sm:$0xff] %v2000
    %2017 = vst [vmem:[#allocation2 + $0x38] sm:$0xff] %v2001
    %2018 = vst [vmem:[#allocation2 + $0x40] sm:$0xff] %v2002
    %2019 = vst [vmem:[#allocation2 + $0x48] sm:$0xff] %v2003
    %2020 = vst [vmem:[#allocation2 + $0x50] sm:$0xff] %v2004
    %2021 = vst [vmem:[#allocation2 + $0x58] sm:$0xff] %v2005
    %2022 = vst [vmem:[#allocation2 + $0x60] sm:$0xff] %v2006
    %2023 = vst [vmem:[#allocation2 + $0x68] sm:$0xff] %v2007
    %2024 = vst [vmem:[#allocation2 + $0x70] sm:$0xff] %v2008
    %2025 = vst [vmem:[#allocation2 + $0x78] sm:$0xff] %v2009
    // Predicated region
    $region30: #{tpu_custom_call.1} parent=1 // pred_check
      %p2026 = pneg %p54
    $region31: #{tpu_custom_call.1} parent=1 // pred_check_branch
      %2028 = sbr.rel (%p2026) target = $region33
    $region32: #{tpu_custom_call.1} parent=1 // pred_region
      %v2029 = vld [vmem:[#allocation2] sm:$0xff]
      %v2030 = vld [vmem:[#allocation2 + $0x8] sm:$0xff]
      %v2031 = vld [vmem:[#allocation2 + $0x10] sm:$0xff]
      %v2032 = vld [vmem:[#allocation2 + $0x18] sm:$0xff]
      %v2033 = vld [vmem:[#allocation2 + $0x20] sm:$0xff]
      %v2034 = vld [vmem:[#allocation2 + $0x28] sm:$0xff]
      %v2035 = vld [vmem:[#allocation2 + $0x30] sm:$0xff]
      %v2036 = vld [vmem:[#allocation2 + $0x38] sm:$0xff]
      %v2037 = vld [vmem:[#allocation2 + $0x40] sm:$0xff]
      %v2038 = vld [vmem:[#allocation2 + $0x48] sm:$0xff]
      %v2039 = vld [vmem:[#allocation2 + $0x50] sm:$0xff]
      %v2040 = vld [vmem:[#allocation2 + $0x58] sm:$0xff]
      %v2041 = vld [vmem:[#allocation2 + $0x60] sm:$0xff]
      %v2042 = vld [vmem:[#allocation2 + $0x68] sm:$0xff]
      %v2043 = vld [vmem:[#allocation2 + $0x70] sm:$0xff]
      %v2044 = vld [vmem:[#allocation2 + $0x78] sm:$0xff]
      %v2045 = vld [vmem:[#allocation8] sm:$0xff]
      %v2047 = vlaneseq
      %v2048 = vshrl.u32 %v2047, 7
      %v2049 = vsub.s32 0, %v2048
      %v2050 = vrot.slane %v2045, %v2049
      %v2051 = vlaneseq
      %v2052 = vshrl.u32 %v2051, 7
      %v2053 = vsub.s32 1, %v2052
      %v2054 = vrot.slane %v2045, %v2053
      %v2055 = vlaneseq
      %v2056 = vshrl.u32 %v2055, 7
      %v2057 = vsub.s32 2, %v2056
      %v2058 = vrot.slane %v2045, %v2057
      %v2059 = vlaneseq
      %v2060 = vshrl.u32 %v2059, 7
      %v2061 = vsub.s32 3, %v2060
      %v2062 = vrot.slane %v2045, %v2061
      %v2063 = vlaneseq
      %v2064 = vshrl.u32 %v2063, 7
      %v2065 = vsub.s32 4, %v2064
      %v2066 = vrot.slane %v2045, %v2065
      %v2067 = vlaneseq
      %v2068 = vshrl.u32 %v2067, 7
      %v2069 = vsub.s32 5, %v2068
      %v2070 = vrot.slane %v2045, %v2069
      %v2071 = vlaneseq
      %v2072 = vshrl.u32 %v2071, 7
      %v2073 = vsub.s32 6, %v2072
      %v2074 = vrot.slane %v2045, %v2073
      %v2075 = vlaneseq
      %v2076 = vshrl.u32 %v2075, 7
      %v2077 = vsub.s32 7, %v2076
      %v2078 = vrot.slane %v2045, %v2077
      %v2087 = vadd.f32 %v2029, %v2050
      %v2088 = vadd.f32 %v2030, %v2054
      %v2089 = vadd.f32 %v2031, %v2058
      %v2090 = vadd.f32 %v2032, %v2062
      %v2091 = vadd.f32 %v2033, %v2066
      %v2092 = vadd.f32 %v2034, %v2070
      %v2093 = vadd.f32 %v2035, %v2074
      %v2094 = vadd.f32 %v2036, %v2078
      %v2095 = vadd.f32 %v2037, %v2050
      %v2096 = vadd.f32 %v2038, %v2054
      %v2097 = vadd.f32 %v2039, %v2058
      %v2098 = vadd.f32 %v2040, %v2062
      %v2099 = vadd.f32 %v2041, %v2066
      %v2100 = vadd.f32 %v2042, %v2070
      %v2101 = vadd.f32 %v2043, %v2074
      %v2102 = vadd.f32 %v2044, %v2078
      %v2103 = vpack.c.bf16 %v2095, %v2087
      %v2104 = vpack.c.bf16 %v2096, %v2088
      %v2105 = vpack.c.bf16 %v2097, %v2089
      %v2106 = vpack.c.bf16 %v2098, %v2090
      %v2107 = vpack.c.bf16 %v2099, %v2091
      %v2108 = vpack.c.bf16 %v2100, %v2092
      %v2109 = vpack.c.bf16 %v2101, %v2093
      %v2110 = vpack.c.bf16 %v2102, %v2094
      %v2119 = vunpack.c.l.b16 %v2103
      %v2120 = vunpack.c.l.b16 %v2104
      %v2121 = vunpack.c.l.b16 %v2105
      %v2122 = vunpack.c.l.b16 %v2106
      %v2123 = vunpack.c.l.b16 %v2107
      %v2124 = vunpack.c.l.b16 %v2108
      %v2125 = vunpack.c.l.b16 %v2109
      %v2126 = vunpack.c.l.b16 %v2110
      %v2127 = vunpack.c.h.b16 %v2103
      %v2128 = vunpack.c.h.b16 %v2104
      %v2129 = vunpack.c.h.b16 %v2105
      %v2130 = vunpack.c.h.b16 %v2106
      %v2131 = vunpack.c.h.b16 %v2107
      %v2132 = vunpack.c.h.b16 %v2108
      %v2133 = vunpack.c.h.b16 %v2109
      %v2134 = vunpack.c.h.b16 %v2110
      %v2135 = vpack.c.b16 %v2120, %v2119
      %v2136 = vpack.c.b16 %v2122, %v2121
      %v2137 = vpack.c.b16 %v2124, %v2123
      %v2138 = vpack.c.b16 %v2126, %v2125
      %v2139 = vpack.c.b16 %v2128, %v2127
      %v2140 = vpack.c.b16 %v2130, %v2129
      %v2141 = vpack.c.b16 %v2132, %v2131
      %v2142 = vpack.c.b16 %v2134, %v2133
      %2151 = vst [vmem:[#allocation9] sm:$0xff] %v2135
      %2152 = vst [vmem:[#allocation9 + $0x8] sm:$0xff] %v2136
      %2153 = vst [vmem:[#allocation9 + $0x10] sm:$0xff] %v2137
      %2154 = vst [vmem:[#allocation9 + $0x18] sm:$0xff] %v2138
      %2155 = vst [vmem:[#allocation9 + $0x20] sm:$0xff] %v2139
      %2156 = vst [vmem:[#allocation9 + $0x28] sm:$0xff] %v2140
      %2157 = vst [vmem:[#allocation9 + $0x30] sm:$0xff] %v2141
      %2158 = vst [vmem:[#allocation9 + $0x38] sm:$0xff] %v2142
    $region33: #{tpu_custom_call.1} parent=1 // pred_fallthru
      _
    // Predicated region
    $region34: #{tpu_custom_call.1} parent=1 // pred_check
      _
    $region35: #{tpu_custom_call.1} parent=1 // pred_check_branch
      %2160 = sbr.rel (0) target = $region37
    $region36: #{tpu_custom_call.1} parent=1 // pred_region
      %s2162 = ssub.s32 1024, 1024
      %2163 = vsyncadd [#allocation5], %s2162
      %s2164 = sshll.u32 [#allocation9], 4
      %s2165 = int_to_ptr.vmem [resolvable:$true] %s2164
      %2170 = dma.vmem_to_hbm [thread:$0]  %s2165, 1024, %s3, [#allocation5], 512, 512, 32
    $region37: #{tpu_custom_call.1} parent=1 // pred_fallthru
      _
    // Predicated region
    $region38: #{tpu_custom_call.1} parent=1 // pred_check
      _
    $region39: #{tpu_custom_call.1} parent=1 // pred_check_branch
      %2172 = sbr.rel (0) target = $region41
    $region40: #{tpu_custom_call.1} parent=1 // pred_region
      %2173 = dma.done [#allocation5], 1024
    $region41: #{tpu_custom_call.1} parent=1 // pred_fallthru
      _
    %2174 = vsyncpa [#allocation4], 1
    %2175 = vsyncpa [#allocation7], 1
    %2176 = vsyncpa [#allocation5], 1

</llo_original>
